<compile_context>
chip_gen: v5e
topology: v5e:2x2
jax: 0.10.0
libtpu: 0.0.40
codegen_flags: <defaults>
</compile_context>

<pallas_src>
import functools

import jax
import jax.numpy as jnp
from jax.experimental import pallas as pl
from jax.experimental.pallas import tpu as pltpu

# Full-f32 matmul numerics everywhere (reference einsums + kernel dots under interpret).
jax.config.update("jax_default_matmul_precision", "highest")

LANE = 128  # TPU lane width; each Q/K/V slab and each output slab is one full lane tile.


def _attention_kernel(x_ref, wqkv_ref, bqkv_ref, out_ref, attn_ref, *, batch, seq, lane):
    # Fused QKV projection on the MXU: (B*T, C) @ (C, 3*LANE) + (1, 3*LANE) bias.
    x = x_ref[...]                                                     # (B*T, C)
    qkv = jnp.dot(x, wqkv_ref[...], preferred_element_type=jnp.float32)
    qkv = qkv + bqkv_ref[...]                                          # (B*T, 3*LANE)

    # Lane-tile-aligned slab views (offsets 0 / 128 / 256): zero-cost, no relayout.
    # 1/sqrt(C) is already folded into the Q slab; lanes >= C are exact zeros.
    q = qkv[:, 0 * lane:1 * lane]
    k = qkv[:, 1 * lane:2 * lane]
    v = qkv[:, 2 * lane:3 * lane]

    # Constant [I_T | 0]: places the (T, T) attention block into a full 128-lane slab
    # with one tiny MXU matmul (keeps the attn store full-width / unmasked).
    pad_eye = jnp.eye(seq, lane, dtype=jnp.float32)

    for b in range(batch):                      # static unroll; everything stays 2-D
        r0, r1 = b * seq, (b + 1) * seq         # sublane-aligned row window
        qb = q[r0:r1, :]
        kb = k[r0:r1, :]
        vb = v[r0:r1, :]

        # scores = Q @ K^T; zero-padded lanes C..127 cancel in the contraction.
        s = jax.lax.dot_general(qb, kb, (((1,), (1,)), ((), ())),
                                preferred_element_type=jnp.float32)    # (T, T)

        # Numerically stable softmax with an exact divide (module-level numerics).
        m = jnp.max(s, axis=-1, keepdims=True)
        e = jnp.exp(s - m)
        a = e / jnp.sum(e, axis=-1, keepdims=True)                     # (T, T)

        # Lane-dense, sublane-aligned stores (full (8, 128) vregs, unmasked).
        out_ref[r0:r1, :] = jnp.dot(a, vb, preferred_element_type=jnp.float32)
        attn_ref[r0:r1, :] = jnp.dot(a, pad_eye, preferred_element_type=jnp.float32)


def prepare_qkv_params(wq, bq, wk, bk, wv, bv):
    """One-time parameter prep (cache across calls, do NOT call per step):
    pre-transpose nn.Linear weights to (in, out), fold 1/sqrt(C) into the Q slab,
    zero-pad each slab to a full 128-lane tile, and fuse QKV into one matrix."""
    C = wq.shape[0]
    scale = 1.0 / jnp.sqrt(jnp.float32(C))

    def slab(w_t, b):
        w_pad = jnp.zeros((C, LANE), jnp.float32).at[:, :C].set(w_t)
        b_pad = jnp.zeros((LANE,), jnp.float32).at[:C].set(b)
        return w_pad, b_pad

    wq_p, bq_p = slab(wq.T * scale, bq * scale)
    wk_p, bk_p = slab(wk.T, bk)
    wv_p, bv_p = slab(wv.T, bv)
    wqkv = jnp.concatenate([wq_p, wk_p, wv_p], axis=1)                  # (C, 3*LANE)
    bqkv = jnp.concatenate([bq_p, bk_p, bv_p]).reshape(1, 3 * LANE)     # (1, 3*LANE)
    return wqkv, bqkv


def simple_attention(x, wqkv, bqkv):
    """x: (B, T, C) f32. wqkv: (C, 3*128) fused padded weight. bqkv: (1, 3*128) bias."""
    B, T, C = x.shape
    x2 = x.reshape(B * T, C)    # fold batch into rows -> one fused projection matmul

    kernel = functools.partial(_attention_kernel, batch=B, seq=T, lane=LANE)
    out_pad, attn_pad = pl.pallas_call(
        kernel,
        out_shape=(
            jax.ShapeDtypeStruct((B * T, LANE), jnp.float32),   # out slab (lanes >= C are 0)
            jax.ShapeDtypeStruct((B * T, LANE), jnp.float32),   # attn slab (lanes >= T are 0)
        ),
        grid_spec=pltpu.PrefetchScalarGridSpec(
            num_scalar_prefetch=0,
            grid=(1,),   # single step: whole problem fits in VMEM, no per-step overhead
            in_specs=[
                pl.BlockSpec((B * T, C), lambda i: (0, 0)),
                pl.BlockSpec((C, 3 * LANE), lambda i: (0, 0)),
                pl.BlockSpec((1, 3 * LANE), lambda i: (0, 0)),
            ],
            out_specs=(
                pl.BlockSpec((B * T, LANE), lambda i: (0, 0)),
                pl.BlockSpec((B * T, LANE), lambda i: (0, 0)),
            ),
        ),
        compiler_params=pltpu.CompilerParams(
            dimension_semantics=("arbitrary",)),
    )(x2, wqkv, bqkv)

    out = out_pad[:, :C].reshape(B, T, C)
    attn = attn_pad[:, :T].reshape(B, T, T)
    return out, attn


def _reference(x, wq, bq, wk, bk, wv, bv):
    # Exact PyTorch-module semantics in f32.
    hp = jax.lax.Precision.HIGHEST
    q = jnp.einsum("btc,oc->bto", x, wq, precision=hp) + bq
    k = jnp.einsum("btc,oc->bto", x, wk, precision=hp) + bk
    v = jnp.einsum("btc,oc->bto", x, wv, precision=hp) + bv
    scores = jnp.einsum("btc,bsc->bts", q, k, precision=hp) / jnp.sqrt(jnp.float32(q.shape[-1]))
    attn = jax.nn.softmax(scores, axis=-1)
    out = jnp.einsum("bts,bsc->btc", attn, v, precision=hp)
    return out, attn


if __name__ == "__main__":
    B, T, C = 2, 8, 32   # batch=2, seq=8, embedding_dim=32

    key = jax.random.PRNGKey(0)
    kx, kwq, kbq, kwk, kbk, kwv, kbv = jax.random.split(key, 7)

    x = jax.random.normal(kx, (B, T, C), dtype=jnp.float32)
    # Deterministic param init (mimics nn.Linear uniform(-1/sqrt(C), 1/sqrt(C)))
    bound = 1.0 / (C ** 0.5)
    wq = jax.random.uniform(kwq, (C, C), jnp.float32, -bound, bound)
    bq = jax.random.uniform(kbq, (C,), jnp.float32, -bound, bound)
    wk = jax.random.uniform(kwk, (C, C), jnp.float32, -bound, bound)
    bk = jax.random.uniform(kbk, (C,), jnp.float32, -bound, bound)
    wv = jax.random.uniform(kwv, (C, C), jnp.float32, -bound, bound)
    bv = jax.random.uniform(kbv, (C,), jnp.float32, -bound, bound)

    # One-time fused/pre-transposed/lane-padded parameter prep.
    wqkv, bqkv = prepare_qkv_params(wq, bq, wk, bk, wv, bv)

    out, attn = simple_attention(x, wqkv, bqkv)
    jax.block_until_ready((out, attn))

    ref_out, ref_attn = _reference(x, wq, bq, wk, bk, wv, bv)
    assert jnp.allclose(out, ref_out, atol=1e-4, rtol=1e-4), "output mismatch"
    assert jnp.allclose(attn, ref_attn, atol=1e-4, rtol=1e-4), "attention mismatch"

    print("KERNEL_OK")
</pallas_src>

<mosaic_0001>
module attributes {stable_mosaic.version = 11 : i64} {
  func.func @_attention_kernel(%arg0: i32, %arg1: memref<16x32xf32, #tpu.memory_space<vmem>>, %arg2: memref<32x384xf32, #tpu.memory_space<vmem>>, %arg3: memref<1x384xf32, #tpu.memory_space<vmem>>, %arg4: memref<16x128xf32, #tpu.memory_space<vmem>>, %arg5: memref<16x128xf32, #tpu.memory_space<vmem>>) attributes {dimension_semantics = [#tpu.dimension_semantics<arbitrary>], iteration_bounds = array<i64: 1>, scalar_prefetch = 0 : i64, scratch_operands = 0 : i64, tpu.core_type = #tpu.core_type<tc>, window_params = [{pipeline_mode = #tpu.pipeline_mode<synchronous>, transform_indices = @transform_0, window_bounds = array<i64: 16, 32>}, {pipeline_mode = #tpu.pipeline_mode<synchronous>, transform_indices = @transform_1, window_bounds = array<i64: 32, 384>}, {pipeline_mode = #tpu.pipeline_mode<synchronous>, transform_indices = @transform_2, window_bounds = array<i64: 1, 384>}, {pipeline_mode = #tpu.pipeline_mode<synchronous>, transform_indices = @transform_3, window_bounds = array<i64: 16, 128>}, {pipeline_mode = #tpu.pipeline_mode<synchronous>, transform_indices = @transform_4, window_bounds = array<i64: 16, 128>}]} {
    %c0 = arith.constant 0 : index
    %c0_0 = arith.constant 0 : index
    %0 = vector.load %arg1[%c0, %c0_0] : memref<16x32xf32, #tpu.memory_space<vmem>>, vector<16x32xf32>
    %c0_1 = arith.constant 0 : index
    %c0_2 = arith.constant 0 : index
    %1 = vector.load %arg2[%c0_1, %c0_2] : memref<32x384xf32, #tpu.memory_space<vmem>>, vector<32x384xf32>
    %cst = arith.constant dense<0.000000e+00> : vector<16x384xf32>
    %2 = tpu.matmul %0, %1, %cst {dimension_numbers = #tpu.dot_dimension_numbers<[1], [0], [0], [1], [0, 0, 1, 1], [], []>, precision = #tpu.contract_precision<fp32>} : vector<16x32xf32>, vector<32x384xf32>, vector<16x384xf32> -> vector<16x384xf32>
    %c0_3 = arith.constant 0 : index
    %c0_4 = arith.constant 0 : index
    %3 = vector.load %arg3[%c0_3, %c0_4] : memref<1x384xf32, #tpu.memory_space<vmem>>, vector<1x384xf32>
    %4 = vector.broadcast %3 : vector<1x384xf32> to vector<16x384xf32>
    %5 = arith.addf %2, %4 : vector<16x384xf32>
    %6 = vector.extract_strided_slice %5 {offsets = [0, 0], sizes = [16, 128], strides = [1, 1]} : vector<16x384xf32> to vector<16x128xf32>
    %7 = vector.extract_strided_slice %5 {offsets = [0, 128], sizes = [16, 128], strides = [1, 1]} : vector<16x384xf32> to vector<16x128xf32>
    %8 = vector.extract_strided_slice %5 {offsets = [0, 256], sizes = [16, 128], strides = [1, 1]} : vector<16x384xf32> to vector<16x128xf32>
    %9 = tpu.iota {dimensions = array<i32: 0>} : vector<8x128xi32>
    %10 = tpu.iota {dimensions = array<i32: 1>} : vector<8x128xi32>
    %c0_i32 = arith.constant 0 : i32
    %11 = vector.broadcast %c0_i32 : i32 to vector<8x128xi32>
    %12 = arith.addi %9, %11 : vector<8x128xi32>
    %13 = arith.cmpi eq, %12, %10 : vector<8x128xi32>
    %14 = arith.extui %13 : vector<8x128xi1> to vector<8x128xi32>
    %15 = arith.sitofp %14 : vector<8x128xi32> to vector<8x128xf32>
    %16 = vector.extract_strided_slice %6 {offsets = [0, 0], sizes = [8, 128], strides = [1, 1]} : vector<16x128xf32> to vector<8x128xf32>
    %17 = vector.extract_strided_slice %7 {offsets = [0, 0], sizes = [8, 128], strides = [1, 1]} : vector<16x128xf32> to vector<8x128xf32>
    %18 = vector.extract_strided_slice %8 {offsets = [0, 0], sizes = [8, 128], strides = [1, 1]} : vector<16x128xf32> to vector<8x128xf32>
    %cst_5 = arith.constant dense<0.000000e+00> : vector<8x8xf32>
    %19 = tpu.matmul %16, %17, %cst_5 {dimension_numbers = #tpu.dot_dimension_numbers<[1], [1], [0], [0], [0, 0, 1, 0], [], []>, precision = #tpu.contract_precision<fp32>} : vector<8x128xf32>, vector<8x128xf32>, vector<8x8xf32> -> vector<8x8xf32>
    %cst_6 = arith.constant dense<0xFF800000> : vector<8xf32>
    %20 = vector.multi_reduction <maximumf>, %19, %cst_6 [1] : vector<8x8xf32> to vector<8xf32>
    %21 = vector.shape_cast %20 : vector<8xf32> to vector<8x1xf32>
    %22 = vector.broadcast %21 : vector<8x1xf32> to vector<8x8xf32>
    %23 = arith.subf %19, %22 : vector<8x8xf32>
    %24 = math.exp %23 : vector<8x8xf32>
    %cst_7 = arith.constant dense<0.000000e+00> : vector<8xf32>
    %25 = vector.multi_reduction <add>, %24, %cst_7 [1] : vector<8x8xf32> to vector<8xf32>
    %26 = vector.shape_cast %25 : vector<8xf32> to vector<8x1xf32>
    %27 = vector.broadcast %26 : vector<8x1xf32> to vector<8x8xf32>
    %28 = arith.divf %24, %27 : vector<8x8xf32>
    %cst_8 = arith.constant dense<0.000000e+00> : vector<8x128xf32>
    %29 = tpu.matmul %28, %18, %cst_8 {dimension_numbers = #tpu.dot_dimension_numbers<[1], [0], [0], [1], [0, 0, 1, 1], [], []>, precision = #tpu.contract_precision<fp32>} : vector<8x8xf32>, vector<8x128xf32>, vector<8x128xf32> -> vector<8x128xf32>
    %c0_9 = arith.constant 0 : index
    %c0_10 = arith.constant 0 : index
    %30 = vector.load %arg4[%c0_9, %c0_10] : memref<16x128xf32, #tpu.memory_space<vmem>>, vector<8x128xf32>
    tpu.vector_store %arg4[%c0_9, %c0_10], %29 {strides = array<i32>} : memref<16x128xf32, #tpu.memory_space<vmem>>, vector<8x128xf32>,
    %cst_11 = arith.constant dense<0.000000e+00> : vector<8x128xf32>
    %31 = tpu.matmul %28, %15, %cst_11 {dimension_numbers = #tpu.dot_dimension_numbers<[1], [0], [0], [1], [0, 0, 1, 1], [], []>, precision = #tpu.contract_precision<fp32>} : vector<8x8xf32>, vector<8x128xf32>, vector<8x128xf32> -> vector<8x128xf32>
    %c0_12 = arith.constant 0 : index
    %c0_13 = arith.constant 0 : index
    %32 = vector.load %arg5[%c0_12, %c0_13] : memref<16x128xf32, #tpu.memory_space<vmem>>, vector<8x128xf32>
    tpu.vector_store %arg5[%c0_12, %c0_13], %31 {strides = array<i32>} : memref<16x128xf32, #tpu.memory_space<vmem>>, vector<8x128xf32>,
    %33 = vector.extract_strided_slice %6 {offsets = [8, 0], sizes = [8, 128], strides = [1, 1]} : vector<16x128xf32> to vector<8x128xf32>
    %34 = vector.extract_strided_slice %7 {offsets = [8, 0], sizes = [8, 128], strides = [1, 1]} : vector<16x128xf32> to vector<8x128xf32>
    %35 = vector.extract_strided_slice %8 {offsets = [8, 0], sizes = [8, 128], strides = [1, 1]} : vector<16x128xf32> to vector<8x128xf32>
    %cst_14 = arith.constant dense<0.000000e+00> : vector<8x8xf32>
    %36 = tpu.matmul %33, %34, %cst_14 {dimension_numbers = #tpu.dot_dimension_numbers<[1], [1], [0], [0], [0, 0, 1, 0], [], []>, precision = #tpu.contract_precision<fp32>} : vector<8x128xf32>, vector<8x128xf32>, vector<8x8xf32> -> vector<8x8xf32>
    %cst_15 = arith.constant dense<0xFF800000> : vector<8xf32>
    %37 = vector.multi_reduction <maximumf>, %36, %cst_15 [1] : vector<8x8xf32> to vector<8xf32>
    %38 = vector.shape_cast %37 : vector<8xf32> to vector<8x1xf32>
    %39 = vector.broadcast %38 : vector<8x1xf32> to vector<8x8xf32>
    %40 = arith.subf %36, %39 : vector<8x8xf32>
    %41 = math.exp %40 : vector<8x8xf32>
    %cst_16 = arith.constant dense<0.000000e+00> : vector<8xf32>
    %42 = vector.multi_reduction <add>, %41, %cst_16 [1] : vector<8x8xf32> to vector<8xf32>
    %43 = vector.shape_cast %42 : vector<8xf32> to vector<8x1xf32>
    %44 = vector.broadcast %43 : vector<8x1xf32> to vector<8x8xf32>
    %45 = arith.divf %41, %44 : vector<8x8xf32>
    %cst_17 = arith.constant dense<0.000000e+00> : vector<8x128xf32>
    %46 = tpu.matmul %45, %35, %cst_17 {dimension_numbers = #tpu.dot_dimension_numbers<[1], [0], [0], [1], [0, 0, 1, 1], [], []>, precision = #tpu.contract_precision<fp32>} : vector<8x8xf32>, vector<8x128xf32>, vector<8x128xf32> -> vector<8x128xf32>
    %c8 = arith.constant 8 : index
    %c0_18 = arith.constant 0 : index
    %47 = vector.load %arg4[%c8, %c0_18] : memref<16x128xf32, #tpu.memory_space<vmem>>, vector<8x128xf32>
    tpu.vector_store %arg4[%c8, %c0_18], %46 {strides = array<i32>} : memref<16x128xf32, #tpu.memory_space<vmem>>, vector<8x128xf32>,
    %cst_19 = arith.constant dense<0.000000e+00> : vector<8x128xf32>
    %48 = tpu.matmul %45, %15, %cst_19 {dimension_numbers = #tpu.dot_dimension_numbers<[1], [0], [0], [1], [0, 0, 1, 1], [], []>, precision = #tpu.contract_precision<fp32>} : vector<8x8xf32>, vector<8x128xf32>, vector<8x128xf32> -> vector<8x128xf32>
    %c8_20 = arith.constant 8 : index
    %c0_21 = arith.constant 0 : index
    %49 = vector.load %arg5[%c8_20, %c0_21] : memref<16x128xf32, #tpu.memory_space<vmem>>, vector<8x128xf32>
    tpu.vector_store %arg5[%c8_20, %c0_21], %48 {strides = array<i32>} : memref<16x128xf32, #tpu.memory_space<vmem>>, vector<8x128xf32>,
    return
  }
  func.func @transform_0(%arg0: i32) -> (i32, i32) {
    %c0_i32 = arith.constant 0 : i32
    %c0_i32_0 = arith.constant 0 : i32
    %c0_i32_1 = arith.constant 0 : i32
    return %c0_i32, %c0_i32_0 : i32, i32
  }
  func.func @transform_1(%arg0: i32) -> (i32, i32) {
    %c0_i32 = arith.constant 0 : i32
    %c0_i32_0 = arith.constant 0 : i32
    %c0_i32_1 = arith.constant 0 : i32
    return %c0_i32, %c0_i32_0 : i32, i32
  }
  func.func @transform_2(%arg0: i32) -> (i32, i32) {
    %c0_i32 = arith.constant 0 : i32
    %c0_i32_0 = arith.constant 0 : i32
    %c0_i32_1 = arith.constant 0 : i32
    return %c0_i32, %c0_i32_0 : i32, i32
  }
  func.func @transform_3(%arg0: i32) -> (i32, i32) {
    %c0_i32 = arith.constant 0 : i32
    %c0_i32_0 = arith.constant 0 : i32
    %c0_i32_1 = arith.constant 0 : i32
    return %c0_i32, %c0_i32_0 : i32, i32
  }
  func.func @transform_4(%arg0: i32) -> (i32, i32) {
    %c0_i32 = arith.constant 0 : i32
    %c0_i32_0 = arith.constant 0 : i32
    %c0_i32_1 = arith.constant 0 : i32
    return %c0_i32, %c0_i32_0 : i32, i32
  }
}

</mosaic_0001>

<llo_original>
// kernel: tpu_custom_call.1
$region0: #{tpu_custom_call.1}
  #allocation0 [shape = 'u32[]', space=smem, size = 0x4, offset = 0x4, fixed_abs, tag = 'smem constant byte address 0x4 - core index']
  #allocation1 [shape = 'u32[72,128]{1,0:T(1,128)}', space=vmem, size = 0x9000, scoped, tag = 'internal scratch']
  %s0 = inlined_call_operand.hbm [shape: f32[16,32], index: 0, kind: input, shape index: {}]
  %s1 = inlined_call_operand.hbm [shape: f32[32,384], index: 1, kind: input, shape index: {}]
  %s2 = inlined_call_operand.hbm [shape: f32[1,384], index: 2, kind: input, shape index: {}]
  %s3 = inlined_call_operand.hbm [shape: f32[16,128], index: 3, kind: output, shape index: {0}]
  %s4 = inlined_call_operand.hbm [shape: f32[16,128], index: 4, kind: output, shape index: {1}]
  %5 = xla_tuple %s3, %s4
  %s6 = sld [smem:[#allocation0]]
  $region42: #{tpu_custom_call.1} parent=0
    _
  %s8 = ssub.s32 1, %s6
  %s9 = scalar_select 0, %s8, %s6
  $region1: #{tpu_custom_call.1} parent=0
    #allocation2 [shape = 'u8[8192]{0}', space=vmem, size = 0x2000, scoped, tag = 'input window, operand 0, single buffered']
    #allocation3 [shape = 's32[1]{0}', space=sflag, size = 0x4, scoped, tag = 'scoped memory for tpu_custom_call.1']
    #allocation4 [shape = 's32[1]{0}', space=sflag, size = 0x4, scoped, tag = 'scoped memory for tpu_custom_call.1']
    #allocation5 [shape = 'u8[49152]{0}', space=vmem, size = 0xc000, scoped, tag = 'input window, operand 1, single buffered']
    #allocation6 [shape = 's32[1]{0}', space=sflag, size = 0x4, scoped, tag = 'scoped memory for tpu_custom_call.1']
    #allocation7 [shape = 'u8[1536]{0}', space=vmem, size = 0x800, scoped, tag = 'input window, operand 2, single buffered']
    #allocation8 [shape = 'u8[8192]{0}', space=vmem, size = 0x2000, scoped, tag = 'output window, operand 0, single buffered']
    #allocation9 [shape = 'u8[8192]{0}', space=vmem, size = 0x2000, scoped, tag = 'output window, operand 1, single buffered']
    #allocation10 [shape = 's32[1]{0}', space=sflag, size = 0x4, scoped, tag = 'scoped memory for tpu_custom_call.1']
    %10 = vsyncpa [#allocation3], 0
    %11 = vsyncpa [#allocation6], 0
    %12 = vsyncpa [#allocation4], 0
    %13 = vsyncpa [#allocation10], 0
    // Predicated region
    $region2: #{tpu_custom_call.1} parent=1 // pred_check
      _
    $region3: #{tpu_custom_call.1} parent=1 // pred_check_branch
      %15 = sbr.rel (0) target = $region5
    $region4: #{tpu_custom_call.1} parent=1 // pred_region
      %17 = vsyncadd [#allocation3], 0
      %s18 = sshll.u32 %s0, 4
      %s19 = int_to_ptr.hbm [resolvable:$true] %s18
      %s20 = sshll.u32 [#allocation2], 4
      %s21 = int_to_ptr.vmem [resolvable:$true] %s20
      %26 = dma.hbm_to_vmem [thread:$0]  %s19, 256, %s21, [#allocation3], 128, 128, 8
    $region5: #{tpu_custom_call.1} parent=1 // pred_fallthru
      _
    // Predicated region
    $region6: #{tpu_custom_call.1} parent=1 // pred_check
      _
    $region7: #{tpu_custom_call.1} parent=1 // pred_check_branch
      %28 = sbr.rel (0) target = $region9
    $region8: #{tpu_custom_call.1} parent=1 // pred_region
      %30 = vsyncadd [#allocation6], 0
      %s31 = sshll.u32 %s1, 4
      %s32 = int_to_ptr.hbm [resolvable:$true] %s31
      %s33 = sshll.u32 [#allocation5], 4
      %s34 = int_to_ptr.vmem [resolvable:$true] %s33
      %39 = dma.hbm_to_vmem [thread:$0]  %s32, 1536, %s34, [#allocation6], 384, 384, 24
    $region9: #{tpu_custom_call.1} parent=1 // pred_fallthru
      _
    // Predicated region
    $region10: #{tpu_custom_call.1} parent=1 // pred_check
      _
    $region11: #{tpu_custom_call.1} parent=1 // pred_check_branch
      %41 = sbr.rel (0) target = $region13
    $region12: #{tpu_custom_call.1} parent=1 // pred_region
      %43 = vsyncadd [#allocation6], 0
      %s45 = sshll.u32 %s2, 4
      %s46 = int_to_ptr.hbm [resolvable:$true] %s45
      %s47 = sshll.u32 [#allocation7], 4
      %s48 = int_to_ptr.vmem [resolvable:$true] %s47
      %50 = dma.hbm_to_vmem [thread:$0]  %s46, 48, %s48, [#allocation6]
    $region13: #{tpu_custom_call.1} parent=1 // pred_fallthru
      _
    // Predicated region
    $region14: #{tpu_custom_call.1} parent=1 // pred_check
      _
    $region15: #{tpu_custom_call.1} parent=1 // pred_check_branch
      %52 = sbr.rel (0) target = $region17
    $region16: #{tpu_custom_call.1} parent=1 // pred_region
      %54 = dma.done [#allocation3], 256
    $region17: #{tpu_custom_call.1} parent=1 // pred_fallthru
      _
    // Predicated region
    $region18: #{tpu_custom_call.1} parent=1 // pred_check
      _
    $region19: #{tpu_custom_call.1} parent=1 // pred_check_branch
      %56 = sbr.rel (0) target = $region21
    $region20: #{tpu_custom_call.1} parent=1 // pred_region
      %58 = dma.done [#allocation6], 1536
    $region21: #{tpu_custom_call.1} parent=1 // pred_fallthru
      _
    // Predicated region
    $region22: #{tpu_custom_call.1} parent=1 // pred_check
      _
    $region23: #{tpu_custom_call.1} parent=1 // pred_check_branch
      %60 = sbr.rel (0) target = $region25
    $region24: #{tpu_custom_call.1} parent=1 // pred_region
      %62 = dma.done [#allocation6], 48
    $region25: #{tpu_custom_call.1} parent=1 // pred_fallthru
      _
    %v63 = vld [vmem:[#allocation2] sm:$0xff]
    %v64 = vld [vmem:[#allocation2 + $0x8] sm:$0xff]
    %v65 = vld [vmem:[#allocation5] sm:$0xff]
    %v66 = vld [vmem:[#allocation5 + $0x8] sm:$0xff]
    %v67 = vld [vmem:[#allocation5 + $0x10] sm:$0xff]
    %v68 = vld [vmem:[#allocation5 + $0x18] sm:$0xff]
    %v69 = vld [vmem:[#allocation5 + $0x20] sm:$0xff]
    %v70 = vld [vmem:[#allocation5 + $0x28] sm:$0xff]
    %v71 = vld [vmem:[#allocation5 + $0x30] sm:$0xff]
    %v72 = vld [vmem:[#allocation5 + $0x38] sm:$0xff]
    %v73 = vld [vmem:[#allocation5 + $0x40] sm:$0xff]
    %v74 = vld [vmem:[#allocation5 + $0x48] sm:$0xff]
    %v75 = vld [vmem:[#allocation5 + $0x50] sm:$0xff]
    %v76 = vld [vmem:[#allocation5 + $0x58] sm:$0xff]
    %v77 = vld [vmem:[#allocation7] sm:$0x7]
    %v79 = vperm.slane %v77, 0
    %v80 = vperm.slane %v77, 1
    %v81 = vperm.slane %v77, 2
    %vm85 = vcmask 261120
    %v87 = vsel %vm85, %v63, 0
    %v90 = vsel %vm85, %v64, 0
    %92 = vmatpush.msra.mxu0 0.0
    %93 = vmatpush.msra.mxu0 0.0
    %94 = vmatpush.msra.mxu0 0.0
    %95 = vmatpush.msra.mxu0 0.0
    %96 = vmatpush.msra.mxu0 0.0
    %97 = vmatpush.msra.mxu0 0.0
    %98 = vmatpush.msra.mxu0 0.0
    %99 = vmatpush.msra.mxu0 0.0
    %100 = vmatpush.msra.mxu0 0.0
    %101 = vmatpush.msra.mxu0 0.0
    %102 = vmatpush.msra.mxu0 0.0
    %103 = vmatpush.msra.mxu0 0.0
    %v104 = vand.u32 %v74, 4294901760
    %105 = vmatpush.msra.mxu0 %v104
    %v106 = vand.u32 %v71, 4294901760
    %107 = vmatpush.msra.mxu0 %v106
    %v108 = vand.u32 %v68, 4294901760
    %109 = vmatpush.msra.mxu0 %v108
    %v110 = vand.u32 %v65, 4294901760
    %111 = vmatpush.msra.mxu0 %v110
    %v112 = vand.u32 %v87, 4294901760
    %v113 = vsub.f32 %v87, %v112
    %v114 = vand.u32 %v113, 4294901760
    %v115 = vsub.f32 %v113, %v114
    %v116 = vand.u32 %v115, 4294901760
    %117 = vmatmul.f32.gmra.mxu0 %v116
    %v118 = vpop.f32.mrf.mxu0
    %v119 = vadd.f32 %v79, %v118
    %v120 = vand.u32 %v90, 4294901760
    %v121 = vsub.f32 %v90, %v120
    %v122 = vand.u32 %v121, 4294901760
    %v123 = vsub.f32 %v121, %v122
    %v124 = vand.u32 %v123, 4294901760
    %125 = vmatmul.f32.gmra.mxu0 %v124
    %v126 = vpop.f32.mrf.mxu0
    %v127 = vadd.f32 %v79, %v126
    %128 = vdwg.mxu0
    %129 = vmatpush.msra.mxu0 0.0
    %130 = vmatpush.msra.mxu0 0.0
    %131 = vmatpush.msra.mxu0 0.0
    %132 = vmatpush.msra.mxu0 0.0
    %133 = vmatpush.msra.mxu0 0.0
    %134 = vmatpush.msra.mxu0 0.0
    %135 = vmatpush.msra.mxu0 0.0
    %136 = vmatpush.msra.mxu0 0.0
    %137 = vmatpush.msra.mxu0 0.0
    %138 = vmatpush.msra.mxu0 0.0
    %139 = vmatpush.msra.mxu0 0.0
    %140 = vmatpush.msra.mxu0 0.0
    %v141 = vand.u32 %v74, 4294901760
    %v142 = vsub.f32 %v74, %v141
    %v143 = vand.u32 %v142, 4294901760
    %v144 = vsub.f32 %v142, %v143
    %v145 = vand.u32 %v144, 4294901760
    %146 = vmatpush.msra.mxu0 %v145
    %v147 = vand.u32 %v71, 4294901760
    %v148 = vsub.f32 %v71, %v147
    %v149 = vand.u32 %v148, 4294901760
    %v150 = vsub.f32 %v148, %v149
    %v151 = vand.u32 %v150, 4294901760
    %152 = vmatpush.msra.mxu0 %v151
    %v153 = vand.u32 %v68, 4294901760
    %v154 = vsub.f32 %v68, %v153
    %v155 = vand.u32 %v154, 4294901760
    %v156 = vsub.f32 %v154, %v155
    %v157 = vand.u32 %v156, 4294901760
    %158 = vmatpush.msra.mxu0 %v157
    %v159 = vand.u32 %v65, 4294901760
    %v160 = vsub.f32 %v65, %v159
    %v161 = vand.u32 %v160, 4294901760
    %v162 = vsub.f32 %v160, %v161
    %v163 = vand.u32 %v162, 4294901760
    %164 = vmatpush.msra.mxu0 %v163
    %v165 = vand.u32 %v87, 4294901760
    %166 = vmatmul.f32.gmra.mxu0 %v165
    %v167 = vpop.f32.mrf.mxu0
    %v168 = vadd.f32 %v119, %v167
    %v169 = vand.u32 %v90, 4294901760
    %170 = vmatmul.f32.gmra.mxu0 %v169
    %v171 = vpop.f32.mrf.mxu0
    %v172 = vadd.f32 %v127, %v171
    %173 = vdwg.mxu0
    %174 = vmatpush.msra.mxu0 0.0
    %175 = vmatpush.msra.mxu0 0.0
    %176 = vmatpush.msra.mxu0 0.0
    %177 = vmatpush.msra.mxu0 0.0
    %178 = vmatpush.msra.mxu0 0.0
    %179 = vmatpush.msra.mxu0 0.0
    %180 = vmatpush.msra.mxu0 0.0
    %181 = vmatpush.msra.mxu0 0.0
    %182 = vmatpush.msra.mxu0 0.0
    %183 = vmatpush.msra.mxu0 0.0
    %184 = vmatpush.msra.mxu0 0.0
    %185 = vmatpush.msra.mxu0 0.0
    %v186 = vand.u32 %v74, 4294901760
    %v187 = vsub.f32 %v74, %v186
    %188 = vmatpush.msra.mxu0 %v187
    %v189 = vand.u32 %v71, 4294901760
    %v190 = vsub.f32 %v71, %v189
    %191 = vmatpush.msra.mxu0 %v190
    %v192 = vand.u32 %v68, 4294901760
    %v193 = vsub.f32 %v68, %v192
    %194 = vmatpush.msra.mxu0 %v193
    %v195 = vand.u32 %v65, 4294901760
    %v196 = vsub.f32 %v65, %v195
    %197 = vmatpush.msra.mxu0 %v196
    %v198 = vand.u32 %v87, 4294901760
    %v199 = vsub.f32 %v87, %v198
    %200 = vmatmul.f32.gmra.mxu0 %v199
    %v201 = vpop.f32.mrf.mxu0
    %v202 = vadd.f32 %v168, %v201
    %v203 = vand.u32 %v90, 4294901760
    %v204 = vsub.f32 %v90, %v203
    %205 = vmatmul.f32.gmra.mxu0 %v204
    %v206 = vpop.f32.mrf.mxu0
    %v207 = vadd.f32 %v172, %v206
    %208 = vdwg.mxu0
    %209 = vmatpush.msra.mxu0 0.0
    %210 = vmatpush.msra.mxu0 0.0
    %211 = vmatpush.msra.mxu0 0.0
    %212 = vmatpush.msra.mxu0 0.0
    %213 = vmatpush.msra.mxu0 0.0
    %214 = vmatpush.msra.mxu0 0.0
    %215 = vmatpush.msra.mxu0 0.0
    %216 = vmatpush.msra.mxu0 0.0
    %217 = vmatpush.msra.mxu0 0.0
    %218 = vmatpush.msra.mxu0 0.0
    %219 = vmatpush.msra.mxu0 0.0
    %220 = vmatpush.msra.mxu0 0.0
    %v221 = vand.u32 %v74, 4294901760
    %222 = vmatpush.msra.mxu0 %v221
    %v223 = vand.u32 %v71, 4294901760
    %224 = vmatpush.msra.mxu0 %v223
    %v225 = vand.u32 %v68, 4294901760
    %226 = vmatpush.msra.mxu0 %v225
    %v227 = vand.u32 %v65, 4294901760
    %228 = vmatpush.msra.mxu0 %v227
    %v229 = vand.u32 %v87, 4294901760
    %v230 = vsub.f32 %v87, %v229
    %v231 = vand.u32 %v230, 4294901760
    %232 = vmatmul.f32.gmra.mxu0 %v231
    %v233 = vpop.f32.mrf.mxu0
    %v234 = vadd.f32 %v202, %v233
    %v235 = vand.u32 %v90, 4294901760
    %v236 = vsub.f32 %v90, %v235
    %v237 = vand.u32 %v236, 4294901760
    %238 = vmatmul.f32.gmra.mxu0 %v237
    %v239 = vpop.f32.mrf.mxu0
    %v240 = vadd.f32 %v207, %v239
    %241 = vdwg.mxu0
    %242 = vmatpush.msra.mxu0 0.0
    %243 = vmatpush.msra.mxu0 0.0
    %244 = vmatpush.msra.mxu0 0.0
    %245 = vmatpush.msra.mxu0 0.0
    %246 = vmatpush.msra.mxu0 0.0
    %247 = vmatpush.msra.mxu0 0.0
    %248 = vmatpush.msra.mxu0 0.0
    %249 = vmatpush.msra.mxu0 0.0
    %250 = vmatpush.msra.mxu0 0.0
    %251 = vmatpush.msra.mxu0 0.0
    %252 = vmatpush.msra.mxu0 0.0
    %253 = vmatpush.msra.mxu0 0.0
    %v254 = vand.u32 %v74, 4294901760
    %v255 = vsub.f32 %v74, %v254
    %v256 = vand.u32 %v255, 4294901760
    %257 = vmatpush.msra.mxu0 %v256
    %v258 = vand.u32 %v71, 4294901760
    %v259 = vsub.f32 %v71, %v258
    %v260 = vand.u32 %v259, 4294901760
    %261 = vmatpush.msra.mxu0 %v260
    %v262 = vand.u32 %v68, 4294901760
    %v263 = vsub.f32 %v68, %v262
    %v264 = vand.u32 %v263, 4294901760
    %265 = vmatpush.msra.mxu0 %v264
    %v266 = vand.u32 %v65, 4294901760
    %v267 = vsub.f32 %v65, %v266
    %v268 = vand.u32 %v267, 4294901760
    %269 = vmatpush.msra.mxu0 %v268
    %v270 = vand.u32 %v87, 4294901760
    %271 = vmatmul.f32.gmra.mxu0 %v270
    %v272 = vpop.f32.mrf.mxu0
    %v273 = vadd.f32 %v234, %v272
    %v274 = vand.u32 %v90, 4294901760
    %275 = vmatmul.f32.gmra.mxu0 %v274
    %v276 = vpop.f32.mrf.mxu0
    %v277 = vadd.f32 %v240, %v276
    %278 = vdwg.mxu0
    %279 = vmatpush.msra.mxu0 0.0
    %280 = vmatpush.msra.mxu0 0.0
    %281 = vmatpush.msra.mxu0 0.0
    %282 = vmatpush.msra.mxu0 0.0
    %283 = vmatpush.msra.mxu0 0.0
    %284 = vmatpush.msra.mxu0 0.0
    %285 = vmatpush.msra.mxu0 0.0
    %286 = vmatpush.msra.mxu0 0.0
    %287 = vmatpush.msra.mxu0 0.0
    %288 = vmatpush.msra.mxu0 0.0
    %289 = vmatpush.msra.mxu0 0.0
    %290 = vmatpush.msra.mxu0 0.0
    %v291 = vand.u32 %v74, 4294901760
    %292 = vmatpush.msra.mxu0 %v291
    %v293 = vand.u32 %v71, 4294901760
    %294 = vmatpush.msra.mxu0 %v293
    %v295 = vand.u32 %v68, 4294901760
    %296 = vmatpush.msra.mxu0 %v295
    %v297 = vand.u32 %v65, 4294901760
    %298 = vmatpush.msra.mxu0 %v297
    %v299 = vand.u32 %v87, 4294901760
    %300 = vmatmul.f32.gmra.mxu0 %v299
    %v301 = vpop.f32.mrf.mxu0
    %v302 = vadd.f32 %v273, %v301
    %v303 = vand.u32 %v90, 4294901760
    %304 = vmatmul.f32.gmra.mxu0 %v303
    %v305 = vpop.f32.mrf.mxu0
    %v306 = vadd.f32 %v277, %v305
    %307 = vdwg.mxu0
    %308 = vmatpush.msra.mxu0 0.0
    %309 = vmatpush.msra.mxu0 0.0
    %310 = vmatpush.msra.mxu0 0.0
    %311 = vmatpush.msra.mxu0 0.0
    %312 = vmatpush.msra.mxu0 0.0
    %313 = vmatpush.msra.mxu0 0.0
    %314 = vmatpush.msra.mxu0 0.0
    %315 = vmatpush.msra.mxu0 0.0
    %316 = vmatpush.msra.mxu0 0.0
    %317 = vmatpush.msra.mxu0 0.0
    %318 = vmatpush.msra.mxu0 0.0
    %319 = vmatpush.msra.mxu0 0.0
    %v320 = vand.u32 %v75, 4294901760
    %321 = vmatpush.msra.mxu0 %v320
    %v322 = vand.u32 %v72, 4294901760
    %323 = vmatpush.msra.mxu0 %v322
    %v324 = vand.u32 %v69, 4294901760
    %325 = vmatpush.msra.mxu0 %v324
    %v326 = vand.u32 %v66, 4294901760
    %327 = vmatpush.msra.mxu0 %v326
    %v328 = vand.u32 %v87, 4294901760
    %v329 = vsub.f32 %v87, %v328
    %v330 = vand.u32 %v329, 4294901760
    %v331 = vsub.f32 %v329, %v330
    %v332 = vand.u32 %v331, 4294901760
    %333 = vmatmul.f32.gmra.mxu0 %v332
    %v334 = vpop.f32.mrf.mxu0
    %v335 = vadd.f32 %v80, %v334
    %v336 = vand.u32 %v90, 4294901760
    %v337 = vsub.f32 %v90, %v336
    %v338 = vand.u32 %v337, 4294901760
    %v339 = vsub.f32 %v337, %v338
    %v340 = vand.u32 %v339, 4294901760
    %341 = vmatmul.f32.gmra.mxu0 %v340
    %v342 = vpop.f32.mrf.mxu0
    %v343 = vadd.f32 %v80, %v342
    %344 = vdwg.mxu0
    %345 = vmatpush.msra.mxu0 0.0
    %346 = vmatpush.msra.mxu0 0.0
    %347 = vmatpush.msra.mxu0 0.0
    %348 = vmatpush.msra.mxu0 0.0
    %349 = vmatpush.msra.mxu0 0.0
    %350 = vmatpush.msra.mxu0 0.0
    %351 = vmatpush.msra.mxu0 0.0
    %352 = vmatpush.msra.mxu0 0.0
    %353 = vmatpush.msra.mxu0 0.0
    %354 = vmatpush.msra.mxu0 0.0
    %355 = vmatpush.msra.mxu0 0.0
    %356 = vmatpush.msra.mxu0 0.0
    %v357 = vand.u32 %v75, 4294901760
    %v358 = vsub.f32 %v75, %v357
    %v359 = vand.u32 %v358, 4294901760
    %v360 = vsub.f32 %v358, %v359
    %v361 = vand.u32 %v360, 4294901760
    %362 = vmatpush.msra.mxu0 %v361
    %v363 = vand.u32 %v72, 4294901760
    %v364 = vsub.f32 %v72, %v363
    %v365 = vand.u32 %v364, 4294901760
    %v366 = vsub.f32 %v364, %v365
    %v367 = vand.u32 %v366, 4294901760
    %368 = vmatpush.msra.mxu0 %v367
    %v369 = vand.u32 %v69, 4294901760
    %v370 = vsub.f32 %v69, %v369
    %v371 = vand.u32 %v370, 4294901760
    %v372 = vsub.f32 %v370, %v371
    %v373 = vand.u32 %v372, 4294901760
    %374 = vmatpush.msra.mxu0 %v373
    %v375 = vand.u32 %v66, 4294901760
    %v376 = vsub.f32 %v66, %v375
    %v377 = vand.u32 %v376, 4294901760
    %v378 = vsub.f32 %v376, %v377
    %v379 = vand.u32 %v378, 4294901760
    %380 = vmatpush.msra.mxu0 %v379
    %v381 = vand.u32 %v87, 4294901760
    %382 = vmatmul.f32.gmra.mxu0 %v381
    %v383 = vpop.f32.mrf.mxu0
    %v384 = vadd.f32 %v335, %v383
    %v385 = vand.u32 %v90, 4294901760
    %386 = vmatmul.f32.gmra.mxu0 %v385
    %v387 = vpop.f32.mrf.mxu0
    %v388 = vadd.f32 %v343, %v387
    %389 = vdwg.mxu0
    %390 = vmatpush.msra.mxu0 0.0
    %391 = vmatpush.msra.mxu0 0.0
    %392 = vmatpush.msra.mxu0 0.0
    %393 = vmatpush.msra.mxu0 0.0
    %394 = vmatpush.msra.mxu0 0.0
    %395 = vmatpush.msra.mxu0 0.0
    %396 = vmatpush.msra.mxu0 0.0
    %397 = vmatpush.msra.mxu0 0.0
    %398 = vmatpush.msra.mxu0 0.0
    %399 = vmatpush.msra.mxu0 0.0
    %400 = vmatpush.msra.mxu0 0.0
    %401 = vmatpush.msra.mxu0 0.0
    %v402 = vand.u32 %v75, 4294901760
    %v403 = vsub.f32 %v75, %v402
    %404 = vmatpush.msra.mxu0 %v403
    %v405 = vand.u32 %v72, 4294901760
    %v406 = vsub.f32 %v72, %v405
    %407 = vmatpush.msra.mxu0 %v406
    %v408 = vand.u32 %v69, 4294901760
    %v409 = vsub.f32 %v69, %v408
    %410 = vmatpush.msra.mxu0 %v409
    %v411 = vand.u32 %v66, 4294901760
    %v412 = vsub.f32 %v66, %v411
    %413 = vmatpush.msra.mxu0 %v412
    %v414 = vand.u32 %v87, 4294901760
    %v415 = vsub.f32 %v87, %v414
    %416 = vmatmul.f32.gmra.mxu0 %v415
    %v417 = vpop.f32.mrf.mxu0
    %v418 = vadd.f32 %v384, %v417
    %v419 = vand.u32 %v90, 4294901760
    %v420 = vsub.f32 %v90, %v419
    %421 = vmatmul.f32.gmra.mxu0 %v420
    %v422 = vpop.f32.mrf.mxu0
    %v423 = vadd.f32 %v388, %v422
    %424 = vdwg.mxu0
    %425 = vmatpush.msra.mxu0 0.0
    %426 = vmatpush.msra.mxu0 0.0
    %427 = vmatpush.msra.mxu0 0.0
    %428 = vmatpush.msra.mxu0 0.0
    %429 = vmatpush.msra.mxu0 0.0
    %430 = vmatpush.msra.mxu0 0.0
    %431 = vmatpush.msra.mxu0 0.0
    %432 = vmatpush.msra.mxu0 0.0
    %433 = vmatpush.msra.mxu0 0.0
    %434 = vmatpush.msra.mxu0 0.0
    %435 = vmatpush.msra.mxu0 0.0
    %436 = vmatpush.msra.mxu0 0.0
    %v437 = vand.u32 %v75, 4294901760
    %438 = vmatpush.msra.mxu0 %v437
    %v439 = vand.u32 %v72, 4294901760
    %440 = vmatpush.msra.mxu0 %v439
    %v441 = vand.u32 %v69, 4294901760
    %442 = vmatpush.msra.mxu0 %v441
    %v443 = vand.u32 %v66, 4294901760
    %444 = vmatpush.msra.mxu0 %v443
    %v445 = vand.u32 %v87, 4294901760
    %v446 = vsub.f32 %v87, %v445
    %v447 = vand.u32 %v446, 4294901760
    %448 = vmatmul.f32.gmra.mxu0 %v447
    %v449 = vpop.f32.mrf.mxu0
    %v450 = vadd.f32 %v418, %v449
    %v451 = vand.u32 %v90, 4294901760
    %v452 = vsub.f32 %v90, %v451
    %v453 = vand.u32 %v452, 4294901760
    %454 = vmatmul.f32.gmra.mxu0 %v453
    %v455 = vpop.f32.mrf.mxu0
    %v456 = vadd.f32 %v423, %v455
    %457 = vdwg.mxu0
    %458 = vmatpush.msra.mxu0 0.0
    %459 = vmatpush.msra.mxu0 0.0
    %460 = vmatpush.msra.mxu0 0.0
    %461 = vmatpush.msra.mxu0 0.0
    %462 = vmatpush.msra.mxu0 0.0
    %463 = vmatpush.msra.mxu0 0.0
    %464 = vmatpush.msra.mxu0 0.0
    %465 = vmatpush.msra.mxu0 0.0
    %466 = vmatpush.msra.mxu0 0.0
    %467 = vmatpush.msra.mxu0 0.0
    %468 = vmatpush.msra.mxu0 0.0
    %469 = vmatpush.msra.mxu0 0.0
    %v470 = vand.u32 %v75, 4294901760
    %v471 = vsub.f32 %v75, %v470
    %v472 = vand.u32 %v471, 4294901760
    %473 = vmatpush.msra.mxu0 %v472
    %v474 = vand.u32 %v72, 4294901760
    %v475 = vsub.f32 %v72, %v474
    %v476 = vand.u32 %v475, 4294901760
    %477 = vmatpush.msra.mxu0 %v476
    %v478 = vand.u32 %v69, 4294901760
    %v479 = vsub.f32 %v69, %v478
    %v480 = vand.u32 %v479, 4294901760
    %481 = vmatpush.msra.mxu0 %v480
    %v482 = vand.u32 %v66, 4294901760
    %v483 = vsub.f32 %v66, %v482
    %v484 = vand.u32 %v483, 4294901760
    %485 = vmatpush.msra.mxu0 %v484
    %v486 = vand.u32 %v87, 4294901760
    %487 = vmatmul.f32.gmra.mxu0 %v486
    %v488 = vpop.f32.mrf.mxu0
    %v489 = vadd.f32 %v450, %v488
    %v490 = vand.u32 %v90, 4294901760
    %491 = vmatmul.f32.gmra.mxu0 %v490
    %v492 = vpop.f32.mrf.mxu0
    %v493 = vadd.f32 %v456, %v492
    %494 = vdwg.mxu0
    %495 = vmatpush.msra.mxu0 0.0
    %496 = vmatpush.msra.mxu0 0.0
    %497 = vmatpush.msra.mxu0 0.0
    %498 = vmatpush.msra.mxu0 0.0
    %499 = vmatpush.msra.mxu0 0.0
    %500 = vmatpush.msra.mxu0 0.0
    %501 = vmatpush.msra.mxu0 0.0
    %502 = vmatpush.msra.mxu0 0.0
    %503 = vmatpush.msra.mxu0 0.0
    %504 = vmatpush.msra.mxu0 0.0
    %505 = vmatpush.msra.mxu0 0.0
    %506 = vmatpush.msra.mxu0 0.0
    %v507 = vand.u32 %v75, 4294901760
    %508 = vmatpush.msra.mxu0 %v507
    %v509 = vand.u32 %v72, 4294901760
    %510 = vmatpush.msra.mxu0 %v509
    %v511 = vand.u32 %v69, 4294901760
    %512 = vmatpush.msra.mxu0 %v511
    %v513 = vand.u32 %v66, 4294901760
    %514 = vmatpush.msra.mxu0 %v513
    %v515 = vand.u32 %v87, 4294901760
    %516 = vmatmul.f32.gmra.mxu0 %v515
    %v517 = vpop.f32.mrf.mxu0
    %v518 = vadd.f32 %v489, %v517
    %v519 = vand.u32 %v90, 4294901760
    %520 = vmatmul.f32.gmra.mxu0 %v519
    %v521 = vpop.f32.mrf.mxu0
    %v522 = vadd.f32 %v493, %v521
    %523 = vdwg.mxu0
    %524 = vmatpush.msra.mxu0 0.0
    %525 = vmatpush.msra.mxu0 0.0
    %526 = vmatpush.msra.mxu0 0.0
    %527 = vmatpush.msra.mxu0 0.0
    %528 = vmatpush.msra.mxu0 0.0
    %529 = vmatpush.msra.mxu0 0.0
    %530 = vmatpush.msra.mxu0 0.0
    %531 = vmatpush.msra.mxu0 0.0
    %532 = vmatpush.msra.mxu0 0.0
    %533 = vmatpush.msra.mxu0 0.0
    %534 = vmatpush.msra.mxu0 0.0
    %535 = vmatpush.msra.mxu0 0.0
    %v536 = vand.u32 %v76, 4294901760
    %537 = vmatpush.msra.mxu0 %v536
    %v538 = vand.u32 %v73, 4294901760
    %539 = vmatpush.msra.mxu0 %v538
    %v540 = vand.u32 %v70, 4294901760
    %541 = vmatpush.msra.mxu0 %v540
    %v542 = vand.u32 %v67, 4294901760
    %543 = vmatpush.msra.mxu0 %v542
    %v544 = vand.u32 %v87, 4294901760
    %v545 = vsub.f32 %v87, %v544
    %v546 = vand.u32 %v545, 4294901760
    %v547 = vsub.f32 %v545, %v546
    %v548 = vand.u32 %v547, 4294901760
    %549 = vmatmul.f32.gmra.mxu0 %v548
    %v550 = vpop.f32.mrf.mxu0
    %v551 = vadd.f32 %v81, %v550
    %v552 = vand.u32 %v90, 4294901760
    %v553 = vsub.f32 %v90, %v552
    %v554 = vand.u32 %v553, 4294901760
    %v555 = vsub.f32 %v553, %v554
    %v556 = vand.u32 %v555, 4294901760
    %557 = vmatmul.f32.gmra.mxu0 %v556
    %v558 = vpop.f32.mrf.mxu0
    %v559 = vadd.f32 %v81, %v558
    %560 = vdwg.mxu0
    %561 = vmatpush.msra.mxu0 0.0
    %562 = vmatpush.msra.mxu0 0.0
    %563 = vmatpush.msra.mxu0 0.0
    %564 = vmatpush.msra.mxu0 0.0
    %565 = vmatpush.msra.mxu0 0.0
    %566 = vmatpush.msra.mxu0 0.0
    %567 = vmatpush.msra.mxu0 0.0
    %568 = vmatpush.msra.mxu0 0.0
    %569 = vmatpush.msra.mxu0 0.0
    %570 = vmatpush.msra.mxu0 0.0
    %571 = vmatpush.msra.mxu0 0.0
    %572 = vmatpush.msra.mxu0 0.0
    %v573 = vand.u32 %v76, 4294901760
    %v574 = vsub.f32 %v76, %v573
    %v575 = vand.u32 %v574, 4294901760
    %v576 = vsub.f32 %v574, %v575
    %v577 = vand.u32 %v576, 4294901760
    %578 = vmatpush.msra.mxu0 %v577
    %v579 = vand.u32 %v73, 4294901760
    %v580 = vsub.f32 %v73, %v579
    %v581 = vand.u32 %v580, 4294901760
    %v582 = vsub.f32 %v580, %v581
    %v583 = vand.u32 %v582, 4294901760
    %584 = vmatpush.msra.mxu0 %v583
    %v585 = vand.u32 %v70, 4294901760
    %v586 = vsub.f32 %v70, %v585
    %v587 = vand.u32 %v586, 4294901760
    %v588 = vsub.f32 %v586, %v587
    %v589 = vand.u32 %v588, 4294901760
    %590 = vmatpush.msra.mxu0 %v589
    %v591 = vand.u32 %v67, 4294901760
    %v592 = vsub.f32 %v67, %v591
    %v593 = vand.u32 %v592, 4294901760
    %v594 = vsub.f32 %v592, %v593
    %v595 = vand.u32 %v594, 4294901760
    %596 = vmatpush.msra.mxu0 %v595
    %v597 = vand.u32 %v87, 4294901760
    %598 = vmatmul.f32.gmra.mxu0 %v597
    %v599 = vpop.f32.mrf.mxu0
    %v600 = vadd.f32 %v551, %v599
    %v601 = vand.u32 %v90, 4294901760
    %602 = vmatmul.f32.gmra.mxu0 %v601
    %v603 = vpop.f32.mrf.mxu0
    %v604 = vadd.f32 %v559, %v603
    %605 = vdwg.mxu0
    %606 = vmatpush.msra.mxu0 0.0
    %607 = vmatpush.msra.mxu0 0.0
    %608 = vmatpush.msra.mxu0 0.0
    %609 = vmatpush.msra.mxu0 0.0
    %610 = vmatpush.msra.mxu0 0.0
    %611 = vmatpush.msra.mxu0 0.0
    %612 = vmatpush.msra.mxu0 0.0
    %613 = vmatpush.msra.mxu0 0.0
    %614 = vmatpush.msra.mxu0 0.0
    %615 = vmatpush.msra.mxu0 0.0
    %616 = vmatpush.msra.mxu0 0.0
    %617 = vmatpush.msra.mxu0 0.0
    %v618 = vand.u32 %v76, 4294901760
    %v619 = vsub.f32 %v76, %v618
    %620 = vmatpush.msra.mxu0 %v619
    %v621 = vand.u32 %v73, 4294901760
    %v622 = vsub.f32 %v73, %v621
    %623 = vmatpush.msra.mxu0 %v622
    %v624 = vand.u32 %v70, 4294901760
    %v625 = vsub.f32 %v70, %v624
    %626 = vmatpush.msra.mxu0 %v625
    %v627 = vand.u32 %v67, 4294901760
    %v628 = vsub.f32 %v67, %v627
    %629 = vmatpush.msra.mxu0 %v628
    %v630 = vand.u32 %v87, 4294901760
    %v631 = vsub.f32 %v87, %v630
    %632 = vmatmul.f32.gmra.mxu0 %v631
    %v633 = vpop.f32.mrf.mxu0
    %v634 = vadd.f32 %v600, %v633
    %v635 = vand.u32 %v90, 4294901760
    %v636 = vsub.f32 %v90, %v635
    %637 = vmatmul.f32.gmra.mxu0 %v636
    %v638 = vpop.f32.mrf.mxu0
    %v639 = vadd.f32 %v604, %v638
    %640 = vdwg.mxu0
    %641 = vmatpush.msra.mxu0 0.0
    %642 = vmatpush.msra.mxu0 0.0
    %643 = vmatpush.msra.mxu0 0.0
    %644 = vmatpush.msra.mxu0 0.0
    %645 = vmatpush.msra.mxu0 0.0
    %646 = vmatpush.msra.mxu0 0.0
    %647 = vmatpush.msra.mxu0 0.0
    %648 = vmatpush.msra.mxu0 0.0
    %649 = vmatpush.msra.mxu0 0.0
    %650 = vmatpush.msra.mxu0 0.0
    %651 = vmatpush.msra.mxu0 0.0
    %652 = vmatpush.msra.mxu0 0.0
    %v653 = vand.u32 %v76, 4294901760
    %654 = vmatpush.msra.mxu0 %v653
    %v655 = vand.u32 %v73, 4294901760
    %656 = vmatpush.msra.mxu0 %v655
    %v657 = vand.u32 %v70, 4294901760
    %658 = vmatpush.msra.mxu0 %v657
    %v659 = vand.u32 %v67, 4294901760
    %660 = vmatpush.msra.mxu0 %v659
    %v661 = vand.u32 %v87, 4294901760
    %v662 = vsub.f32 %v87, %v661
    %v663 = vand.u32 %v662, 4294901760
    %664 = vmatmul.f32.gmra.mxu0 %v663
    %v665 = vpop.f32.mrf.mxu0
    %v666 = vadd.f32 %v634, %v665
    %v667 = vand.u32 %v90, 4294901760
    %v668 = vsub.f32 %v90, %v667
    %v669 = vand.u32 %v668, 4294901760
    %670 = vmatmul.f32.gmra.mxu0 %v669
    %v671 = vpop.f32.mrf.mxu0
    %v672 = vadd.f32 %v639, %v671
    %673 = vdwg.mxu0
    %674 = vmatpush.msra.mxu0 0.0
    %675 = vmatpush.msra.mxu0 0.0
    %676 = vmatpush.msra.mxu0 0.0
    %677 = vmatpush.msra.mxu0 0.0
    %678 = vmatpush.msra.mxu0 0.0
    %679 = vmatpush.msra.mxu0 0.0
    %680 = vmatpush.msra.mxu0 0.0
    %681 = vmatpush.msra.mxu0 0.0
    %682 = vmatpush.msra.mxu0 0.0
    %683 = vmatpush.msra.mxu0 0.0
    %684 = vmatpush.msra.mxu0 0.0
    %685 = vmatpush.msra.mxu0 0.0
    %v686 = vand.u32 %v76, 4294901760
    %v687 = vsub.f32 %v76, %v686
    %v688 = vand.u32 %v687, 4294901760
    %689 = vmatpush.msra.mxu0 %v688
    %v690 = vand.u32 %v73, 4294901760
    %v691 = vsub.f32 %v73, %v690
    %v692 = vand.u32 %v691, 4294901760
    %693 = vmatpush.msra.mxu0 %v692
    %v694 = vand.u32 %v70, 4294901760
    %v695 = vsub.f32 %v70, %v694
    %v696 = vand.u32 %v695, 4294901760
    %697 = vmatpush.msra.mxu0 %v696
    %v698 = vand.u32 %v67, 4294901760
    %v699 = vsub.f32 %v67, %v698
    %v700 = vand.u32 %v699, 4294901760
    %701 = vmatpush.msra.mxu0 %v700
    %v702 = vand.u32 %v87, 4294901760
    %703 = vmatmul.f32.gmra.mxu0 %v702
    %v704 = vpop.f32.mrf.mxu0
    %v705 = vadd.f32 %v666, %v704
    %v706 = vand.u32 %v90, 4294901760
    %707 = vmatmul.f32.gmra.mxu0 %v706
    %v708 = vpop.f32.mrf.mxu0
    %v709 = vadd.f32 %v672, %v708
    %710 = vdwg.mxu0
    %711 = vmatpush.msra.mxu0 0.0
    %712 = vmatpush.msra.mxu0 0.0
    %713 = vmatpush.msra.mxu0 0.0
    %714 = vmatpush.msra.mxu0 0.0
    %715 = vmatpush.msra.mxu0 0.0
    %716 = vmatpush.msra.mxu0 0.0
    %717 = vmatpush.msra.mxu0 0.0
    %718 = vmatpush.msra.mxu0 0.0
    %719 = vmatpush.msra.mxu0 0.0
    %720 = vmatpush.msra.mxu0 0.0
    %721 = vmatpush.msra.mxu0 0.0
    %722 = vmatpush.msra.mxu0 0.0
    %v723 = vand.u32 %v76, 4294901760
    %724 = vmatpush.msra.mxu0 %v723
    %v725 = vand.u32 %v73, 4294901760
    %726 = vmatpush.msra.mxu0 %v725
    %v727 = vand.u32 %v70, 4294901760
    %728 = vmatpush.msra.mxu0 %v727
    %v729 = vand.u32 %v67, 4294901760
    %730 = vmatpush.msra.mxu0 %v729
    %v731 = vand.u32 %v87, 4294901760
    %732 = vmatmul.f32.gmra.mxu0 %v731
    %v733 = vpop.f32.mrf.mxu0
    %v734 = vadd.f32 %v705, %v733
    %v735 = vand.u32 %v90, 4294901760
    %736 = vmatmul.f32.gmra.mxu0 %v735
    %v737 = vpop.f32.mrf.mxu0
    %v738 = vadd.f32 %v709, %v737
    %739 = vdwg.mxu0
    %v740 = vlaneseq
    %v741 = vshrl.u32 %v740, 7
    %v742 = vlaneseq
    %v743 = vand.u32 %v742, 127
    %vm744 = vcmp.eq.s32.totalorder %v741, %v743
    %v745 = vsel %vm744, 1, 0
    %v746 = vcvt.s32.f32 %v745
    %747 = vmatpush.xpose.msra.mxu0 0.0
    %748 = vmatpush.xpose.msra.mxu0 0.0
    %749 = vmatpush.xpose.msra.mxu0 0.0
    %750 = vmatpush.xpose.msra.mxu0 0.0
    %751 = vmatpush.xpose.msra.mxu0 0.0
    %752 = vmatpush.xpose.msra.mxu0 0.0
    %753 = vmatpush.xpose.msra.mxu0 0.0
    %754 = vmatpush.xpose.msra.mxu0 0.0
    %755 = vmatpush.xpose.msra.mxu0 0.0
    %756 = vmatpush.xpose.msra.mxu0 0.0
    %757 = vmatpush.xpose.msra.mxu0 0.0
    %758 = vmatpush.xpose.msra.mxu0 0.0
    %759 = vmatpush.xpose.msra.mxu0 0.0
    %760 = vmatpush.xpose.msra.mxu0 0.0
    %761 = vmatpush.xpose.msra.mxu0 0.0
    %v762 = vand.u32 %v518, 4294901760
    %763 = vmatpush.xpose.msra.mxu0 %v762
    %v764 = vand.u32 %v302, 4294901760
    %v765 = vsub.f32 %v302, %v764
    %v766 = vand.u32 %v765, 4294901760
    %v767 = vsub.f32 %v765, %v766
    %v768 = vand.u32 %v767, 4294901760
    %769 = vmatmul.f32.gmra.mxu0 %v768
    %v770 = vpop.f32.mrf.mxu0
    %v771 = vadd.f32 0.0, %v770
    %772 = vdwg.mxu0
    %773 = vmatpush.xpose.msra.mxu0 0.0
    %774 = vmatpush.xpose.msra.mxu0 0.0
    %775 = vmatpush.xpose.msra.mxu0 0.0
    %776 = vmatpush.xpose.msra.mxu0 0.0
    %777 = vmatpush.xpose.msra.mxu0 0.0
    %778 = vmatpush.xpose.msra.mxu0 0.0
    %779 = vmatpush.xpose.msra.mxu0 0.0
    %780 = vmatpush.xpose.msra.mxu0 0.0
    %781 = vmatpush.xpose.msra.mxu0 0.0
    %782 = vmatpush.xpose.msra.mxu0 0.0
    %783 = vmatpush.xpose.msra.mxu0 0.0
    %784 = vmatpush.xpose.msra.mxu0 0.0
    %785 = vmatpush.xpose.msra.mxu0 0.0
    %786 = vmatpush.xpose.msra.mxu0 0.0
    %787 = vmatpush.xpose.msra.mxu0 0.0
    %v788 = vand.u32 %v518, 4294901760
    %v789 = vsub.f32 %v518, %v788
    %v790 = vand.u32 %v789, 4294901760
    %v791 = vsub.f32 %v789, %v790
    %v792 = vand.u32 %v791, 4294901760
    %793 = vmatpush.xpose.msra.mxu0 %v792
    %v794 = vand.u32 %v302, 4294901760
    %795 = vmatmul.f32.gmra.mxu0 %v794
    %v796 = vpop.f32.mrf.mxu0
    %v797 = vadd.f32 %v771, %v796
    %798 = vdwg.mxu0
    %799 = vmatpush.xpose.msra.mxu0 0.0
    %800 = vmatpush.xpose.msra.mxu0 0.0
    %801 = vmatpush.xpose.msra.mxu0 0.0
    %802 = vmatpush.xpose.msra.mxu0 0.0
    %803 = vmatpush.xpose.msra.mxu0 0.0
    %804 = vmatpush.xpose.msra.mxu0 0.0
    %805 = vmatpush.xpose.msra.mxu0 0.0
    %806 = vmatpush.xpose.msra.mxu0 0.0
    %807 = vmatpush.xpose.msra.mxu0 0.0
    %808 = vmatpush.xpose.msra.mxu0 0.0
    %809 = vmatpush.xpose.msra.mxu0 0.0
    %810 = vmatpush.xpose.msra.mxu0 0.0
    %811 = vmatpush.xpose.msra.mxu0 0.0
    %812 = vmatpush.xpose.msra.mxu0 0.0
    %813 = vmatpush.xpose.msra.mxu0 0.0
    %v814 = vand.u32 %v518, 4294901760
    %v815 = vsub.f32 %v518, %v814
    %816 = vmatpush.xpose.msra.mxu0 %v815
    %v817 = vand.u32 %v302, 4294901760
    %v818 = vsub.f32 %v302, %v817
    %819 = vmatmul.f32.gmra.mxu0 %v818
    %v820 = vpop.f32.mrf.mxu0
    %v821 = vadd.f32 %v797, %v820
    %822 = vdwg.mxu0
    %823 = vmatpush.xpose.msra.mxu0 0.0
    %824 = vmatpush.xpose.msra.mxu0 0.0
    %825 = vmatpush.xpose.msra.mxu0 0.0
    %826 = vmatpush.xpose.msra.mxu0 0.0
    %827 = vmatpush.xpose.msra.mxu0 0.0
    %828 = vmatpush.xpose.msra.mxu0 0.0
    %829 = vmatpush.xpose.msra.mxu0 0.0
    %830 = vmatpush.xpose.msra.mxu0 0.0
    %831 = vmatpush.xpose.msra.mxu0 0.0
    %832 = vmatpush.xpose.msra.mxu0 0.0
    %833 = vmatpush.xpose.msra.mxu0 0.0
    %834 = vmatpush.xpose.msra.mxu0 0.0
    %835 = vmatpush.xpose.msra.mxu0 0.0
    %836 = vmatpush.xpose.msra.mxu0 0.0
    %837 = vmatpush.xpose.msra.mxu0 0.0
    %v838 = vand.u32 %v518, 4294901760
    %839 = vmatpush.xpose.msra.mxu0 %v838
    %v840 = vand.u32 %v302, 4294901760
    %v841 = vsub.f32 %v302, %v840
    %v842 = vand.u32 %v841, 4294901760
    %843 = vmatmul.f32.gmra.mxu0 %v842
    %v844 = vpop.f32.mrf.mxu0
    %v845 = vadd.f32 %v821, %v844
    %846 = vdwg.mxu0
    %847 = vmatpush.xpose.msra.mxu0 0.0
    %848 = vmatpush.xpose.msra.mxu0 0.0
    %849 = vmatpush.xpose.msra.mxu0 0.0
    %850 = vmatpush.xpose.msra.mxu0 0.0
    %851 = vmatpush.xpose.msra.mxu0 0.0
    %852 = vmatpush.xpose.msra.mxu0 0.0
    %853 = vmatpush.xpose.msra.mxu0 0.0
    %854 = vmatpush.xpose.msra.mxu0 0.0
    %855 = vmatpush.xpose.msra.mxu0 0.0
    %856 = vmatpush.xpose.msra.mxu0 0.0
    %857 = vmatpush.xpose.msra.mxu0 0.0
    %858 = vmatpush.xpose.msra.mxu0 0.0
    %859 = vmatpush.xpose.msra.mxu0 0.0
    %860 = vmatpush.xpose.msra.mxu0 0.0
    %861 = vmatpush.xpose.msra.mxu0 0.0
    %v862 = vand.u32 %v518, 4294901760
    %v863 = vsub.f32 %v518, %v862
    %v864 = vand.u32 %v863, 4294901760
    %865 = vmatpush.xpose.msra.mxu0 %v864
    %v866 = vand.u32 %v302, 4294901760
    %867 = vmatmul.f32.gmra.mxu0 %v866
    %v868 = vpop.f32.mrf.mxu0
    %v869 = vadd.f32 %v845, %v868
    %870 = vdwg.mxu0
    %871 = vmatpush.xpose.msra.mxu0 0.0
    %872 = vmatpush.xpose.msra.mxu0 0.0
    %873 = vmatpush.xpose.msra.mxu0 0.0
    %874 = vmatpush.xpose.msra.mxu0 0.0
    %875 = vmatpush.xpose.msra.mxu0 0.0
    %876 = vmatpush.xpose.msra.mxu0 0.0
    %877 = vmatpush.xpose.msra.mxu0 0.0
    %878 = vmatpush.xpose.msra.mxu0 0.0
    %879 = vmatpush.xpose.msra.mxu0 0.0
    %880 = vmatpush.xpose.msra.mxu0 0.0
    %881 = vmatpush.xpose.msra.mxu0 0.0
    %882 = vmatpush.xpose.msra.mxu0 0.0
    %883 = vmatpush.xpose.msra.mxu0 0.0
    %884 = vmatpush.xpose.msra.mxu0 0.0
    %885 = vmatpush.xpose.msra.mxu0 0.0
    %v886 = vand.u32 %v518, 4294901760
    %887 = vmatpush.xpose.msra.mxu0 %v886
    %v888 = vand.u32 %v302, 4294901760
    %889 = vmatmul.f32.gmra.mxu0 %v888
    %v890 = vpop.f32.mrf.mxu0
    %v891 = vadd.f32 %v869, %v890
    %892 = vdwg.mxu0
    %vm893 = vcmask 64512
    %v894 = vsel %vm893, %v891, -inf
    %895 = vmax.xlane.f32.xlu0 %v894
    %v896 = vpop.xlane.xlu0 %895
    %v897 = vsub.f32 %v891, %v896
    %v898 = vmul.f32 %v897, 1.442695
    %v899 = vpow.pop %v898
    %v900 = vsel %vm893, %v899, 0.0
    %901 = vadd.xlane.f32.xlu0 %v900
    %v902 = vpop.xlane.xlu0 %901
    %v903 = vrcp.pop %v902
    %v904 = vmul.f32 %v902, %v903
    %v905 = vsub.f32 1.0, %v904
    %v906 = vmul.f32 %v903, %v905
    %v907 = vadd.f32 %v903, %v906
    %vm908 = vweird.f32 %v902
    %vm909 = vweird.f32 %v903
    %vm910 = vmor %vm908, %vm909
    %v911 = vsel %vm910, %v903, %v907
    %v912 = vand.u32 2147483647, %v902
    %vm913 = vcmp.eq.f32.partialorder %v912, 8.507059e+37
    %v914 = vand.u32 %v902, 2147483648
    %v915 = vor.u32 1.1754944e-38, %v914
    %v916 = vsel %vm913, %v915, %v911
    %v917 = vmul.f32 %v899, %v916
    %v919 = vsel %vm893, %v917, 0
    %921 = vmatpush.msra.mxu0 0.0
    %922 = vmatpush.msra.mxu0 0.0
    %923 = vmatpush.msra.mxu0 0.0
    %924 = vmatpush.msra.mxu0 0.0
    %925 = vmatpush.msra.mxu0 0.0
    %926 = vmatpush.msra.mxu0 0.0
    %927 = vmatpush.msra.mxu0 0.0
    %928 = vmatpush.msra.mxu0 0.0
    %929 = vmatpush.msra.mxu0 0.0
    %930 = vmatpush.msra.mxu0 0.0
    %931 = vmatpush.msra.mxu0 0.0
    %932 = vmatpush.msra.mxu0 0.0
    %933 = vmatpush.msra.mxu0 0.0
    %934 = vmatpush.msra.mxu0 0.0
    %935 = vmatpush.msra.mxu0 0.0
    %v936 = vand.u32 %v734, 4294901760
    %937 = vmatpush.msra.mxu0 %v936
    %v938 = vand.u32 %v919, 4294901760
    %v939 = vsub.f32 %v919, %v938
    %v940 = vand.u32 %v939, 4294901760
    %v941 = vsub.f32 %v939, %v940
    %v942 = vand.u32 %v941, 4294901760
    %943 = vmatmul.f32.gmra.mxu0 %v942
    %v944 = vpop.f32.mrf.mxu0
    %v945 = vadd.f32 0.0, %v944
    %946 = vdwg.mxu0
    %947 = vmatpush.msra.mxu0 0.0
    %948 = vmatpush.msra.mxu0 0.0
    %949 = vmatpush.msra.mxu0 0.0
    %950 = vmatpush.msra.mxu0 0.0
    %951 = vmatpush.msra.mxu0 0.0
    %952 = vmatpush.msra.mxu0 0.0
    %953 = vmatpush.msra.mxu0 0.0
    %954 = vmatpush.msra.mxu0 0.0
    %955 = vmatpush.msra.mxu0 0.0
    %956 = vmatpush.msra.mxu0 0.0
    %957 = vmatpush.msra.mxu0 0.0
    %958 = vmatpush.msra.mxu0 0.0
    %959 = vmatpush.msra.mxu0 0.0
    %960 = vmatpush.msra.mxu0 0.0
    %961 = vmatpush.msra.mxu0 0.0
    %v962 = vand.u32 %v734, 4294901760
    %v963 = vsub.f32 %v734, %v962
    %v964 = vand.u32 %v963, 4294901760
    %v965 = vsub.f32 %v963, %v964
    %v966 = vand.u32 %v965, 4294901760
    %967 = vmatpush.msra.mxu0 %v966
    %v968 = vand.u32 %v919, 4294901760
    %969 = vmatmul.f32.gmra.mxu0 %v968
    %v970 = vpop.f32.mrf.mxu0
    %v971 = vadd.f32 %v945, %v970
    %972 = vdwg.mxu0
    %973 = vmatpush.msra.mxu0 0.0
    %974 = vmatpush.msra.mxu0 0.0
    %975 = vmatpush.msra.mxu0 0.0
    %976 = vmatpush.msra.mxu0 0.0
    %977 = vmatpush.msra.mxu0 0.0
    %978 = vmatpush.msra.mxu0 0.0
    %979 = vmatpush.msra.mxu0 0.0
    %980 = vmatpush.msra.mxu0 0.0
    %981 = vmatpush.msra.mxu0 0.0
    %982 = vmatpush.msra.mxu0 0.0
    %983 = vmatpush.msra.mxu0 0.0
    %984 = vmatpush.msra.mxu0 0.0
    %985 = vmatpush.msra.mxu0 0.0
    %986 = vmatpush.msra.mxu0 0.0
    %987 = vmatpush.msra.mxu0 0.0
    %v988 = vand.u32 %v734, 4294901760
    %v989 = vsub.f32 %v734, %v988
    %990 = vmatpush.msra.mxu0 %v989
    %v991 = vand.u32 %v919, 4294901760
    %v992 = vsub.f32 %v919, %v991
    %993 = vmatmul.f32.gmra.mxu0 %v992
    %v994 = vpop.f32.mrf.mxu0
    %v995 = vadd.f32 %v971, %v994
    %996 = vdwg.mxu0
    %997 = vmatpush.msra.mxu0 0.0
    %998 = vmatpush.msra.mxu0 0.0
    %999 = vmatpush.msra.mxu0 0.0
    %1000 = vmatpush.msra.mxu0 0.0
    %1001 = vmatpush.msra.mxu0 0.0
    %1002 = vmatpush.msra.mxu0 0.0
    %1003 = vmatpush.msra.mxu0 0.0
    %1004 = vmatpush.msra.mxu0 0.0
    %1005 = vmatpush.msra.mxu0 0.0
    %1006 = vmatpush.msra.mxu0 0.0
    %1007 = vmatpush.msra.mxu0 0.0
    %1008 = vmatpush.msra.mxu0 0.0
    %1009 = vmatpush.msra.mxu0 0.0
    %1010 = vmatpush.msra.mxu0 0.0
    %1011 = vmatpush.msra.mxu0 0.0
    %v1012 = vand.u32 %v734, 4294901760
    %1013 = vmatpush.msra.mxu0 %v1012
    %v1014 = vand.u32 %v919, 4294901760
    %v1015 = vsub.f32 %v919, %v1014
    %v1016 = vand.u32 %v1015, 4294901760
    %1017 = vmatmul.f32.gmra.mxu0 %v1016
    %v1018 = vpop.f32.mrf.mxu0
    %v1019 = vadd.f32 %v995, %v1018
    %1020 = vdwg.mxu0
    %1021 = vmatpush.msra.mxu0 0.0
    %1022 = vmatpush.msra.mxu0 0.0
    %1023 = vmatpush.msra.mxu0 0.0
    %1024 = vmatpush.msra.mxu0 0.0
    %1025 = vmatpush.msra.mxu0 0.0
    %1026 = vmatpush.msra.mxu0 0.0
    %1027 = vmatpush.msra.mxu0 0.0
    %1028 = vmatpush.msra.mxu0 0.0
    %1029 = vmatpush.msra.mxu0 0.0
    %1030 = vmatpush.msra.mxu0 0.0
    %1031 = vmatpush.msra.mxu0 0.0
    %1032 = vmatpush.msra.mxu0 0.0
    %1033 = vmatpush.msra.mxu0 0.0
    %1034 = vmatpush.msra.mxu0 0.0
    %1035 = vmatpush.msra.mxu0 0.0
    %v1036 = vand.u32 %v734, 4294901760
    %v1037 = vsub.f32 %v734, %v1036
    %v1038 = vand.u32 %v1037, 4294901760
    %1039 = vmatpush.msra.mxu0 %v1038
    %v1040 = vand.u32 %v919, 4294901760
    %1041 = vmatmul.f32.gmra.mxu0 %v1040
    %v1042 = vpop.f32.mrf.mxu0
    %v1043 = vadd.f32 %v1019, %v1042
    %1044 = vdwg.mxu0
    %1045 = vmatpush.msra.mxu0 0.0
    %1046 = vmatpush.msra.mxu0 0.0
    %1047 = vmatpush.msra.mxu0 0.0
    %1048 = vmatpush.msra.mxu0 0.0
    %1049 = vmatpush.msra.mxu0 0.0
    %1050 = vmatpush.msra.mxu0 0.0
    %1051 = vmatpush.msra.mxu0 0.0
    %1052 = vmatpush.msra.mxu0 0.0
    %1053 = vmatpush.msra.mxu0 0.0
    %1054 = vmatpush.msra.mxu0 0.0
    %1055 = vmatpush.msra.mxu0 0.0
    %1056 = vmatpush.msra.mxu0 0.0
    %1057 = vmatpush.msra.mxu0 0.0
    %1058 = vmatpush.msra.mxu0 0.0
    %1059 = vmatpush.msra.mxu0 0.0
    %v1060 = vand.u32 %v734, 4294901760
    %1061 = vmatpush.msra.mxu0 %v1060
    %v1062 = vand.u32 %v919, 4294901760
    %1063 = vmatmul.f32.gmra.mxu0 %v1062
    %v1064 = vpop.f32.mrf.mxu0
    %v1065 = vadd.f32 %v1043, %v1064
    %1066 = vdwg.mxu0
    %1067 = vst [vmem:[#allocation8] sm:$0xff] %v1065
    %1068 = vmatpush.msra.mxu0 0.0
    %1069 = vmatpush.msra.mxu0 0.0
    %1070 = vmatpush.msra.mxu0 0.0
    %1071 = vmatpush.msra.mxu0 0.0
    %1072 = vmatpush.msra.mxu0 0.0
    %1073 = vmatpush.msra.mxu0 0.0
    %1074 = vmatpush.msra.mxu0 0.0
    %1075 = vmatpush.msra.mxu0 0.0
    %1076 = vmatpush.msra.mxu0 0.0
    %1077 = vmatpush.msra.mxu0 0.0
    %1078 = vmatpush.msra.mxu0 0.0
    %1079 = vmatpush.msra.mxu0 0.0
    %1080 = vmatpush.msra.mxu0 0.0
    %1081 = vmatpush.msra.mxu0 0.0
    %1082 = vmatpush.msra.mxu0 0.0
    %v1083 = vand.u32 %v746, 4294901760
    %1084 = vmatpush.msra.mxu0 %v1083
    %v1085 = vand.u32 %v919, 4294901760
    %v1086 = vsub.f32 %v919, %v1085
    %v1087 = vand.u32 %v1086, 4294901760
    %v1088 = vsub.f32 %v1086, %v1087
    %v1089 = vand.u32 %v1088, 4294901760
    %1090 = vmatmul.f32.gmra.mxu0 %v1089
    %v1091 = vpop.f32.mrf.mxu0
    %v1092 = vadd.f32 0.0, %v1091
    %1093 = vdwg.mxu0
    %1094 = vmatpush.msra.mxu0 0.0
    %1095 = vmatpush.msra.mxu0 0.0
    %1096 = vmatpush.msra.mxu0 0.0
    %1097 = vmatpush.msra.mxu0 0.0
    %1098 = vmatpush.msra.mxu0 0.0
    %1099 = vmatpush.msra.mxu0 0.0
    %1100 = vmatpush.msra.mxu0 0.0
    %1101 = vmatpush.msra.mxu0 0.0
    %1102 = vmatpush.msra.mxu0 0.0
    %1103 = vmatpush.msra.mxu0 0.0
    %1104 = vmatpush.msra.mxu0 0.0
    %1105 = vmatpush.msra.mxu0 0.0
    %1106 = vmatpush.msra.mxu0 0.0
    %1107 = vmatpush.msra.mxu0 0.0
    %1108 = vmatpush.msra.mxu0 0.0
    %v1109 = vand.u32 %v746, 4294901760
    %v1110 = vsub.f32 %v746, %v1109
    %v1111 = vand.u32 %v1110, 4294901760
    %v1112 = vsub.f32 %v1110, %v1111
    %v1113 = vand.u32 %v1112, 4294901760
    %1114 = vmatpush.msra.mxu0 %v1113
    %v1115 = vand.u32 %v919, 4294901760
    %1116 = vmatmul.f32.gmra.mxu0 %v1115
    %v1117 = vpop.f32.mrf.mxu0
    %v1118 = vadd.f32 %v1092, %v1117
    %1119 = vdwg.mxu0
    %1120 = vmatpush.msra.mxu0 0.0
    %1121 = vmatpush.msra.mxu0 0.0
    %1122 = vmatpush.msra.mxu0 0.0
    %1123 = vmatpush.msra.mxu0 0.0
    %1124 = vmatpush.msra.mxu0 0.0
    %1125 = vmatpush.msra.mxu0 0.0
    %1126 = vmatpush.msra.mxu0 0.0
    %1127 = vmatpush.msra.mxu0 0.0
    %1128 = vmatpush.msra.mxu0 0.0
    %1129 = vmatpush.msra.mxu0 0.0
    %1130 = vmatpush.msra.mxu0 0.0
    %1131 = vmatpush.msra.mxu0 0.0
    %1132 = vmatpush.msra.mxu0 0.0
    %1133 = vmatpush.msra.mxu0 0.0
    %1134 = vmatpush.msra.mxu0 0.0
    %v1135 = vand.u32 %v746, 4294901760
    %v1136 = vsub.f32 %v746, %v1135
    %1137 = vmatpush.msra.mxu0 %v1136
    %v1138 = vand.u32 %v919, 4294901760
    %v1139 = vsub.f32 %v919, %v1138
    %1140 = vmatmul.f32.gmra.mxu0 %v1139
    %v1141 = vpop.f32.mrf.mxu0
    %v1142 = vadd.f32 %v1118, %v1141
    %1143 = vdwg.mxu0
    %1144 = vmatpush.msra.mxu0 0.0
    %1145 = vmatpush.msra.mxu0 0.0
    %1146 = vmatpush.msra.mxu0 0.0
    %1147 = vmatpush.msra.mxu0 0.0
    %1148 = vmatpush.msra.mxu0 0.0
    %1149 = vmatpush.msra.mxu0 0.0
    %1150 = vmatpush.msra.mxu0 0.0
    %1151 = vmatpush.msra.mxu0 0.0
    %1152 = vmatpush.msra.mxu0 0.0
    %1153 = vmatpush.msra.mxu0 0.0
    %1154 = vmatpush.msra.mxu0 0.0
    %1155 = vmatpush.msra.mxu0 0.0
    %1156 = vmatpush.msra.mxu0 0.0
    %1157 = vmatpush.msra.mxu0 0.0
    %1158 = vmatpush.msra.mxu0 0.0
    %v1159 = vand.u32 %v746, 4294901760
    %1160 = vmatpush.msra.mxu0 %v1159
    %v1161 = vand.u32 %v919, 4294901760
    %v1162 = vsub.f32 %v919, %v1161
    %v1163 = vand.u32 %v1162, 4294901760
    %1164 = vmatmul.f32.gmra.mxu0 %v1163
    %v1165 = vpop.f32.mrf.mxu0
    %v1166 = vadd.f32 %v1142, %v1165
    %1167 = vdwg.mxu0
    %1168 = vmatpush.msra.mxu0 0.0
    %1169 = vmatpush.msra.mxu0 0.0
    %1170 = vmatpush.msra.mxu0 0.0
    %1171 = vmatpush.msra.mxu0 0.0
    %1172 = vmatpush.msra.mxu0 0.0
    %1173 = vmatpush.msra.mxu0 0.0
    %1174 = vmatpush.msra.mxu0 0.0
    %1175 = vmatpush.msra.mxu0 0.0
    %1176 = vmatpush.msra.mxu0 0.0
    %1177 = vmatpush.msra.mxu0 0.0
    %1178 = vmatpush.msra.mxu0 0.0
    %1179 = vmatpush.msra.mxu0 0.0
    %1180 = vmatpush.msra.mxu0 0.0
    %1181 = vmatpush.msra.mxu0 0.0
    %1182 = vmatpush.msra.mxu0 0.0
    %v1183 = vand.u32 %v746, 4294901760
    %v1184 = vsub.f32 %v746, %v1183
    %v1185 = vand.u32 %v1184, 4294901760
    %1186 = vmatpush.msra.mxu0 %v1185
    %v1187 = vand.u32 %v919, 4294901760
    %1188 = vmatmul.f32.gmra.mxu0 %v1187
    %v1189 = vpop.f32.mrf.mxu0
    %v1190 = vadd.f32 %v1166, %v1189
    %1191 = vdwg.mxu0
    %1192 = vmatpush.msra.mxu0 0.0
    %1193 = vmatpush.msra.mxu0 0.0
    %1194 = vmatpush.msra.mxu0 0.0
    %1195 = vmatpush.msra.mxu0 0.0
    %1196 = vmatpush.msra.mxu0 0.0
    %1197 = vmatpush.msra.mxu0 0.0
    %1198 = vmatpush.msra.mxu0 0.0
    %1199 = vmatpush.msra.mxu0 0.0
    %1200 = vmatpush.msra.mxu0 0.0
    %1201 = vmatpush.msra.mxu0 0.0
    %1202 = vmatpush.msra.mxu0 0.0
    %1203 = vmatpush.msra.mxu0 0.0
    %1204 = vmatpush.msra.mxu0 0.0
    %1205 = vmatpush.msra.mxu0 0.0
    %1206 = vmatpush.msra.mxu0 0.0
    %v1207 = vand.u32 %v746, 4294901760
    %1208 = vmatpush.msra.mxu0 %v1207
    %v1209 = vand.u32 %v919, 4294901760
    %1210 = vmatmul.f32.gmra.mxu0 %v1209
    %v1211 = vpop.f32.mrf.mxu0
    %v1212 = vadd.f32 %v1190, %v1211
    %1213 = vdwg.mxu0
    %1214 = vst [vmem:[#allocation9] sm:$0xff] %v1212
    %1215 = vmatpush.xpose.msra.mxu0 0.0
    %1216 = vmatpush.xpose.msra.mxu0 0.0
    %1217 = vmatpush.xpose.msra.mxu0 0.0
    %1218 = vmatpush.xpose.msra.mxu0 0.0
    %1219 = vmatpush.xpose.msra.mxu0 0.0
    %1220 = vmatpush.xpose.msra.mxu0 0.0
    %1221 = vmatpush.xpose.msra.mxu0 0.0
    %1222 = vmatpush.xpose.msra.mxu0 0.0
    %1223 = vmatpush.xpose.msra.mxu0 0.0
    %1224 = vmatpush.xpose.msra.mxu0 0.0
    %1225 = vmatpush.xpose.msra.mxu0 0.0
    %1226 = vmatpush.xpose.msra.mxu0 0.0
    %1227 = vmatpush.xpose.msra.mxu0 0.0
    %1228 = vmatpush.xpose.msra.mxu0 0.0
    %1229 = vmatpush.xpose.msra.mxu0 0.0
    %v1230 = vand.u32 %v522, 4294901760
    %1231 = vmatpush.xpose.msra.mxu0 %v1230
    %v1232 = vand.u32 %v306, 4294901760
    %v1233 = vsub.f32 %v306, %v1232
    %v1234 = vand.u32 %v1233, 4294901760
    %v1235 = vsub.f32 %v1233, %v1234
    %v1236 = vand.u32 %v1235, 4294901760
    %1237 = vmatmul.f32.gmra.mxu0 %v1236
    %v1238 = vpop.f32.mrf.mxu0
    %v1239 = vadd.f32 0.0, %v1238
    %1240 = vdwg.mxu0
    %1241 = vmatpush.xpose.msra.mxu0 0.0
    %1242 = vmatpush.xpose.msra.mxu0 0.0
    %1243 = vmatpush.xpose.msra.mxu0 0.0
    %1244 = vmatpush.xpose.msra.mxu0 0.0
    %1245 = vmatpush.xpose.msra.mxu0 0.0
    %1246 = vmatpush.xpose.msra.mxu0 0.0
    %1247 = vmatpush.xpose.msra.mxu0 0.0
    %1248 = vmatpush.xpose.msra.mxu0 0.0
    %1249 = vmatpush.xpose.msra.mxu0 0.0
    %1250 = vmatpush.xpose.msra.mxu0 0.0
    %1251 = vmatpush.xpose.msra.mxu0 0.0
    %1252 = vmatpush.xpose.msra.mxu0 0.0
    %1253 = vmatpush.xpose.msra.mxu0 0.0
    %1254 = vmatpush.xpose.msra.mxu0 0.0
    %1255 = vmatpush.xpose.msra.mxu0 0.0
    %v1256 = vand.u32 %v522, 4294901760
    %v1257 = vsub.f32 %v522, %v1256
    %v1258 = vand.u32 %v1257, 4294901760
    %v1259 = vsub.f32 %v1257, %v1258
    %v1260 = vand.u32 %v1259, 4294901760
    %1261 = vmatpush.xpose.msra.mxu0 %v1260
    %v1262 = vand.u32 %v306, 4294901760
    %1263 = vmatmul.f32.gmra.mxu0 %v1262
    %v1264 = vpop.f32.mrf.mxu0
    %v1265 = vadd.f32 %v1239, %v1264
    %1266 = vdwg.mxu0
    %1267 = vmatpush.xpose.msra.mxu0 0.0
    %1268 = vmatpush.xpose.msra.mxu0 0.0
    %1269 = vmatpush.xpose.msra.mxu0 0.0
    %1270 = vmatpush.xpose.msra.mxu0 0.0
    %1271 = vmatpush.xpose.msra.mxu0 0.0
    %1272 = vmatpush.xpose.msra.mxu0 0.0
    %1273 = vmatpush.xpose.msra.mxu0 0.0
    %1274 = vmatpush.xpose.msra.mxu0 0.0
    %1275 = vmatpush.xpose.msra.mxu0 0.0
    %1276 = vmatpush.xpose.msra.mxu0 0.0
    %1277 = vmatpush.xpose.msra.mxu0 0.0
    %1278 = vmatpush.xpose.msra.mxu0 0.0
    %1279 = vmatpush.xpose.msra.mxu0 0.0
    %1280 = vmatpush.xpose.msra.mxu0 0.0
    %1281 = vmatpush.xpose.msra.mxu0 0.0
    %v1282 = vand.u32 %v522, 4294901760
    %v1283 = vsub.f32 %v522, %v1282
    %1284 = vmatpush.xpose.msra.mxu0 %v1283
    %v1285 = vand.u32 %v306, 4294901760
    %v1286 = vsub.f32 %v306, %v1285
    %1287 = vmatmul.f32.gmra.mxu0 %v1286
    %v1288 = vpop.f32.mrf.mxu0
    %v1289 = vadd.f32 %v1265, %v1288
    %1290 = vdwg.mxu0
    %1291 = vmatpush.xpose.msra.mxu0 0.0
    %1292 = vmatpush.xpose.msra.mxu0 0.0
    %1293 = vmatpush.xpose.msra.mxu0 0.0
    %1294 = vmatpush.xpose.msra.mxu0 0.0
    %1295 = vmatpush.xpose.msra.mxu0 0.0
    %1296 = vmatpush.xpose.msra.mxu0 0.0
    %1297 = vmatpush.xpose.msra.mxu0 0.0
    %1298 = vmatpush.xpose.msra.mxu0 0.0
    %1299 = vmatpush.xpose.msra.mxu0 0.0
    %1300 = vmatpush.xpose.msra.mxu0 0.0
    %1301 = vmatpush.xpose.msra.mxu0 0.0
    %1302 = vmatpush.xpose.msra.mxu0 0.0
    %1303 = vmatpush.xpose.msra.mxu0 0.0
    %1304 = vmatpush.xpose.msra.mxu0 0.0
    %1305 = vmatpush.xpose.msra.mxu0 0.0
    %v1306 = vand.u32 %v522, 4294901760
    %1307 = vmatpush.xpose.msra.mxu0 %v1306
    %v1308 = vand.u32 %v306, 4294901760
    %v1309 = vsub.f32 %v306, %v1308
    %v1310 = vand.u32 %v1309, 4294901760
    %1311 = vmatmul.f32.gmra.mxu0 %v1310
    %v1312 = vpop.f32.mrf.mxu0
    %v1313 = vadd.f32 %v1289, %v1312
    %1314 = vdwg.mxu0
    %1315 = vmatpush.xpose.msra.mxu0 0.0
    %1316 = vmatpush.xpose.msra.mxu0 0.0
    %1317 = vmatpush.xpose.msra.mxu0 0.0
    %1318 = vmatpush.xpose.msra.mxu0 0.0
    %1319 = vmatpush.xpose.msra.mxu0 0.0
    %1320 = vmatpush.xpose.msra.mxu0 0.0
    %1321 = vmatpush.xpose.msra.mxu0 0.0
    %1322 = vmatpush.xpose.msra.mxu0 0.0
    %1323 = vmatpush.xpose.msra.mxu0 0.0
    %1324 = vmatpush.xpose.msra.mxu0 0.0
    %1325 = vmatpush.xpose.msra.mxu0 0.0
    %1326 = vmatpush.xpose.msra.mxu0 0.0
    %1327 = vmatpush.xpose.msra.mxu0 0.0
    %1328 = vmatpush.xpose.msra.mxu0 0.0
    %1329 = vmatpush.xpose.msra.mxu0 0.0
    %v1330 = vand.u32 %v522, 4294901760
    %v1331 = vsub.f32 %v522, %v1330
    %v1332 = vand.u32 %v1331, 4294901760
    %1333 = vmatpush.xpose.msra.mxu0 %v1332
    %v1334 = vand.u32 %v306, 4294901760
    %1335 = vmatmul.f32.gmra.mxu0 %v1334
    %v1336 = vpop.f32.mrf.mxu0
    %v1337 = vadd.f32 %v1313, %v1336
    %1338 = vdwg.mxu0
    %1339 = vmatpush.xpose.msra.mxu0 0.0
    %1340 = vmatpush.xpose.msra.mxu0 0.0
    %1341 = vmatpush.xpose.msra.mxu0 0.0
    %1342 = vmatpush.xpose.msra.mxu0 0.0
    %1343 = vmatpush.xpose.msra.mxu0 0.0
    %1344 = vmatpush.xpose.msra.mxu0 0.0
    %1345 = vmatpush.xpose.msra.mxu0 0.0
    %1346 = vmatpush.xpose.msra.mxu0 0.0
    %1347 = vmatpush.xpose.msra.mxu0 0.0
    %1348 = vmatpush.xpose.msra.mxu0 0.0
    %1349 = vmatpush.xpose.msra.mxu0 0.0
    %1350 = vmatpush.xpose.msra.mxu0 0.0
    %1351 = vmatpush.xpose.msra.mxu0 0.0
    %1352 = vmatpush.xpose.msra.mxu0 0.0
    %1353 = vmatpush.xpose.msra.mxu0 0.0
    %v1354 = vand.u32 %v522, 4294901760
    %1355 = vmatpush.xpose.msra.mxu0 %v1354
    %v1356 = vand.u32 %v306, 4294901760
    %1357 = vmatmul.f32.gmra.mxu0 %v1356
    %v1358 = vpop.f32.mrf.mxu0
    %v1359 = vadd.f32 %v1337, %v1358
    %1360 = vdwg.mxu0
    %v1361 = vsel %vm893, %v1359, -inf
    %1362 = vmax.xlane.f32.xlu0 %v1361
    %v1363 = vpop.xlane.xlu0 %1362
    %v1364 = vsub.f32 %v1359, %v1363
    %v1365 = vmul.f32 %v1364, 1.442695
    %v1366 = vpow.pop %v1365
    %v1367 = vsel %vm893, %v1366, 0.0
    %1368 = vadd.xlane.f32.xlu0 %v1367
    %v1369 = vpop.xlane.xlu0 %1368
    %v1370 = vrcp.pop %v1369
    %v1371 = vmul.f32 %v1369, %v1370
    %v1372 = vsub.f32 1.0, %v1371
    %v1373 = vmul.f32 %v1370, %v1372
    %v1374 = vadd.f32 %v1370, %v1373
    %vm1375 = vweird.f32 %v1369
    %vm1376 = vweird.f32 %v1370
    %vm1377 = vmor %vm1375, %vm1376
    %v1378 = vsel %vm1377, %v1370, %v1374
    %v1379 = vand.u32 2147483647, %v1369
    %vm1380 = vcmp.eq.f32.partialorder %v1379, 8.507059e+37
    %v1381 = vand.u32 %v1369, 2147483648
    %v1382 = vor.u32 1.1754944e-38, %v1381
    %v1383 = vsel %vm1380, %v1382, %v1378
    %v1384 = vmul.f32 %v1366, %v1383
    %v1386 = vsel %vm893, %v1384, 0
    %1388 = vmatpush.msra.mxu0 0.0
    %1389 = vmatpush.msra.mxu0 0.0
    %1390 = vmatpush.msra.mxu0 0.0
    %1391 = vmatpush.msra.mxu0 0.0
    %1392 = vmatpush.msra.mxu0 0.0
    %1393 = vmatpush.msra.mxu0 0.0
    %1394 = vmatpush.msra.mxu0 0.0
    %1395 = vmatpush.msra.mxu0 0.0
    %1396 = vmatpush.msra.mxu0 0.0
    %1397 = vmatpush.msra.mxu0 0.0
    %1398 = vmatpush.msra.mxu0 0.0
    %1399 = vmatpush.msra.mxu0 0.0
    %1400 = vmatpush.msra.mxu0 0.0
    %1401 = vmatpush.msra.mxu0 0.0
    %1402 = vmatpush.msra.mxu0 0.0
    %v1403 = vand.u32 %v738, 4294901760
    %1404 = vmatpush.msra.mxu0 %v1403
    %v1405 = vand.u32 %v1386, 4294901760
    %v1406 = vsub.f32 %v1386, %v1405
    %v1407 = vand.u32 %v1406, 4294901760
    %v1408 = vsub.f32 %v1406, %v1407
    %v1409 = vand.u32 %v1408, 4294901760
    %1410 = vmatmul.f32.gmra.mxu0 %v1409
    %v1411 = vpop.f32.mrf.mxu0
    %v1412 = vadd.f32 0.0, %v1411
    %1413 = vdwg.mxu0
    %1414 = vmatpush.msra.mxu0 0.0
    %1415 = vmatpush.msra.mxu0 0.0
    %1416 = vmatpush.msra.mxu0 0.0
    %1417 = vmatpush.msra.mxu0 0.0
    %1418 = vmatpush.msra.mxu0 0.0
    %1419 = vmatpush.msra.mxu0 0.0
    %1420 = vmatpush.msra.mxu0 0.0
    %1421 = vmatpush.msra.mxu0 0.0
    %1422 = vmatpush.msra.mxu0 0.0
    %1423 = vmatpush.msra.mxu0 0.0
    %1424 = vmatpush.msra.mxu0 0.0
    %1425 = vmatpush.msra.mxu0 0.0
    %1426 = vmatpush.msra.mxu0 0.0
    %1427 = vmatpush.msra.mxu0 0.0
    %1428 = vmatpush.msra.mxu0 0.0
    %v1429 = vand.u32 %v738, 4294901760
    %v1430 = vsub.f32 %v738, %v1429
    %v1431 = vand.u32 %v1430, 4294901760
    %v1432 = vsub.f32 %v1430, %v1431
    %v1433 = vand.u32 %v1432, 4294901760
    %1434 = vmatpush.msra.mxu0 %v1433
    %v1435 = vand.u32 %v1386, 4294901760
    %1436 = vmatmul.f32.gmra.mxu0 %v1435
    %v1437 = vpop.f32.mrf.mxu0
    %v1438 = vadd.f32 %v1412, %v1437
    %1439 = vdwg.mxu0
    %1440 = vmatpush.msra.mxu0 0.0
    %1441 = vmatpush.msra.mxu0 0.0
    %1442 = vmatpush.msra.mxu0 0.0
    %1443 = vmatpush.msra.mxu0 0.0
    %1444 = vmatpush.msra.mxu0 0.0
    %1445 = vmatpush.msra.mxu0 0.0
    %1446 = vmatpush.msra.mxu0 0.0
    %1447 = vmatpush.msra.mxu0 0.0
    %1448 = vmatpush.msra.mxu0 0.0
    %1449 = vmatpush.msra.mxu0 0.0
    %1450 = vmatpush.msra.mxu0 0.0
    %1451 = vmatpush.msra.mxu0 0.0
    %1452 = vmatpush.msra.mxu0 0.0
    %1453 = vmatpush.msra.mxu0 0.0
    %1454 = vmatpush.msra.mxu0 0.0
    %v1455 = vand.u32 %v738, 4294901760
    %v1456 = vsub.f32 %v738, %v1455
    %1457 = vmatpush.msra.mxu0 %v1456
    %v1458 = vand.u32 %v1386, 4294901760
    %v1459 = vsub.f32 %v1386, %v1458
    %1460 = vmatmul.f32.gmra.mxu0 %v1459
    %v1461 = vpop.f32.mrf.mxu0
    %v1462 = vadd.f32 %v1438, %v1461
    %1463 = vdwg.mxu0
    %1464 = vmatpush.msra.mxu0 0.0
    %1465 = vmatpush.msra.mxu0 0.0
    %1466 = vmatpush.msra.mxu0 0.0
    %1467 = vmatpush.msra.mxu0 0.0
    %1468 = vmatpush.msra.mxu0 0.0
    %1469 = vmatpush.msra.mxu0 0.0
    %1470 = vmatpush.msra.mxu0 0.0
    %1471 = vmatpush.msra.mxu0 0.0
    %1472 = vmatpush.msra.mxu0 0.0
    %1473 = vmatpush.msra.mxu0 0.0
    %1474 = vmatpush.msra.mxu0 0.0
    %1475 = vmatpush.msra.mxu0 0.0
    %1476 = vmatpush.msra.mxu0 0.0
    %1477 = vmatpush.msra.mxu0 0.0
    %1478 = vmatpush.msra.mxu0 0.0
    %v1479 = vand.u32 %v738, 4294901760
    %1480 = vmatpush.msra.mxu0 %v1479
    %v1481 = vand.u32 %v1386, 4294901760
    %v1482 = vsub.f32 %v1386, %v1481
    %v1483 = vand.u32 %v1482, 4294901760
    %1484 = vmatmul.f32.gmra.mxu0 %v1483
    %v1485 = vpop.f32.mrf.mxu0
    %v1486 = vadd.f32 %v1462, %v1485
    %1487 = vdwg.mxu0
    %1488 = vmatpush.msra.mxu0 0.0
    %1489 = vmatpush.msra.mxu0 0.0
    %1490 = vmatpush.msra.mxu0 0.0
    %1491 = vmatpush.msra.mxu0 0.0
    %1492 = vmatpush.msra.mxu0 0.0
    %1493 = vmatpush.msra.mxu0 0.0
    %1494 = vmatpush.msra.mxu0 0.0
    %1495 = vmatpush.msra.mxu0 0.0
    %1496 = vmatpush.msra.mxu0 0.0
    %1497 = vmatpush.msra.mxu0 0.0
    %1498 = vmatpush.msra.mxu0 0.0
    %1499 = vmatpush.msra.mxu0 0.0
    %1500 = vmatpush.msra.mxu0 0.0
    %1501 = vmatpush.msra.mxu0 0.0
    %1502 = vmatpush.msra.mxu0 0.0
    %v1503 = vand.u32 %v738, 4294901760
    %v1504 = vsub.f32 %v738, %v1503
    %v1505 = vand.u32 %v1504, 4294901760
    %1506 = vmatpush.msra.mxu0 %v1505
    %v1507 = vand.u32 %v1386, 4294901760
    %1508 = vmatmul.f32.gmra.mxu0 %v1507
    %v1509 = vpop.f32.mrf.mxu0
    %v1510 = vadd.f32 %v1486, %v1509
    %1511 = vdwg.mxu0
    %1512 = vmatpush.msra.mxu0 0.0
    %1513 = vmatpush.msra.mxu0 0.0
    %1514 = vmatpush.msra.mxu0 0.0
    %1515 = vmatpush.msra.mxu0 0.0
    %1516 = vmatpush.msra.mxu0 0.0
    %1517 = vmatpush.msra.mxu0 0.0
    %1518 = vmatpush.msra.mxu0 0.0
    %1519 = vmatpush.msra.mxu0 0.0
    %1520 = vmatpush.msra.mxu0 0.0
    %1521 = vmatpush.msra.mxu0 0.0
    %1522 = vmatpush.msra.mxu0 0.0
    %1523 = vmatpush.msra.mxu0 0.0
    %1524 = vmatpush.msra.mxu0 0.0
    %1525 = vmatpush.msra.mxu0 0.0
    %1526 = vmatpush.msra.mxu0 0.0
    %v1527 = vand.u32 %v738, 4294901760
    %1528 = vmatpush.msra.mxu0 %v1527
    %v1529 = vand.u32 %v1386, 4294901760
    %1530 = vmatmul.f32.gmra.mxu0 %v1529
    %v1531 = vpop.f32.mrf.mxu0
    %v1532 = vadd.f32 %v1510, %v1531
    %1533 = vdwg.mxu0
    %1534 = vst [vmem:[#allocation8 + $0x8] sm:$0xff] %v1532
    %1535 = vmatpush.msra.mxu0 0.0
    %1536 = vmatpush.msra.mxu0 0.0
    %1537 = vmatpush.msra.mxu0 0.0
    %1538 = vmatpush.msra.mxu0 0.0
    %1539 = vmatpush.msra.mxu0 0.0
    %1540 = vmatpush.msra.mxu0 0.0
    %1541 = vmatpush.msra.mxu0 0.0
    %1542 = vmatpush.msra.mxu0 0.0
    %1543 = vmatpush.msra.mxu0 0.0
    %1544 = vmatpush.msra.mxu0 0.0
    %1545 = vmatpush.msra.mxu0 0.0
    %1546 = vmatpush.msra.mxu0 0.0
    %1547 = vmatpush.msra.mxu0 0.0
    %1548 = vmatpush.msra.mxu0 0.0
    %1549 = vmatpush.msra.mxu0 0.0
    %v1550 = vand.u32 %v746, 4294901760
    %1551 = vmatpush.msra.mxu0 %v1550
    %v1552 = vand.u32 %v1386, 4294901760
    %v1553 = vsub.f32 %v1386, %v1552
    %v1554 = vand.u32 %v1553, 4294901760
    %v1555 = vsub.f32 %v1553, %v1554
    %v1556 = vand.u32 %v1555, 4294901760
    %1557 = vmatmul.f32.gmra.mxu0 %v1556
    %v1558 = vpop.f32.mrf.mxu0
    %v1559 = vadd.f32 0.0, %v1558
    %1560 = vdwg.mxu0
    %1561 = vmatpush.msra.mxu0 0.0
    %1562 = vmatpush.msra.mxu0 0.0
    %1563 = vmatpush.msra.mxu0 0.0
    %1564 = vmatpush.msra.mxu0 0.0
    %1565 = vmatpush.msra.mxu0 0.0
    %1566 = vmatpush.msra.mxu0 0.0
    %1567 = vmatpush.msra.mxu0 0.0
    %1568 = vmatpush.msra.mxu0 0.0
    %1569 = vmatpush.msra.mxu0 0.0
    %1570 = vmatpush.msra.mxu0 0.0
    %1571 = vmatpush.msra.mxu0 0.0
    %1572 = vmatpush.msra.mxu0 0.0
    %1573 = vmatpush.msra.mxu0 0.0
    %1574 = vmatpush.msra.mxu0 0.0
    %1575 = vmatpush.msra.mxu0 0.0
    %v1576 = vand.u32 %v746, 4294901760
    %v1577 = vsub.f32 %v746, %v1576
    %v1578 = vand.u32 %v1577, 4294901760
    %v1579 = vsub.f32 %v1577, %v1578
    %v1580 = vand.u32 %v1579, 4294901760
    %1581 = vmatpush.msra.mxu0 %v1580
    %v1582 = vand.u32 %v1386, 4294901760
    %1583 = vmatmul.f32.gmra.mxu0 %v1582
    %v1584 = vpop.f32.mrf.mxu0
    %v1585 = vadd.f32 %v1559, %v1584
    %1586 = vdwg.mxu0
    %1587 = vmatpush.msra.mxu0 0.0
    %1588 = vmatpush.msra.mxu0 0.0
    %1589 = vmatpush.msra.mxu0 0.0
    %1590 = vmatpush.msra.mxu0 0.0
    %1591 = vmatpush.msra.mxu0 0.0
    %1592 = vmatpush.msra.mxu0 0.0
    %1593 = vmatpush.msra.mxu0 0.0
    %1594 = vmatpush.msra.mxu0 0.0
    %1595 = vmatpush.msra.mxu0 0.0
    %1596 = vmatpush.msra.mxu0 0.0
    %1597 = vmatpush.msra.mxu0 0.0
    %1598 = vmatpush.msra.mxu0 0.0
    %1599 = vmatpush.msra.mxu0 0.0
    %1600 = vmatpush.msra.mxu0 0.0
    %1601 = vmatpush.msra.mxu0 0.0
    %v1602 = vand.u32 %v746, 4294901760
    %v1603 = vsub.f32 %v746, %v1602
    %1604 = vmatpush.msra.mxu0 %v1603
    %v1605 = vand.u32 %v1386, 4294901760
    %v1606 = vsub.f32 %v1386, %v1605
    %1607 = vmatmul.f32.gmra.mxu0 %v1606
    %v1608 = vpop.f32.mrf.mxu0
    %v1609 = vadd.f32 %v1585, %v1608
    %1610 = vdwg.mxu0
    %1611 = vmatpush.msra.mxu0 0.0
    %1612 = vmatpush.msra.mxu0 0.0
    %1613 = vmatpush.msra.mxu0 0.0
    %1614 = vmatpush.msra.mxu0 0.0
    %1615 = vmatpush.msra.mxu0 0.0
    %1616 = vmatpush.msra.mxu0 0.0
    %1617 = vmatpush.msra.mxu0 0.0
    %1618 = vmatpush.msra.mxu0 0.0
    %1619 = vmatpush.msra.mxu0 0.0
    %1620 = vmatpush.msra.mxu0 0.0
    %1621 = vmatpush.msra.mxu0 0.0
    %1622 = vmatpush.msra.mxu0 0.0
    %1623 = vmatpush.msra.mxu0 0.0
    %1624 = vmatpush.msra.mxu0 0.0
    %1625 = vmatpush.msra.mxu0 0.0
    %v1626 = vand.u32 %v746, 4294901760
    %1627 = vmatpush.msra.mxu0 %v1626
    %v1628 = vand.u32 %v1386, 4294901760
    %v1629 = vsub.f32 %v1386, %v1628
    %v1630 = vand.u32 %v1629, 4294901760
    %1631 = vmatmul.f32.gmra.mxu0 %v1630
    %v1632 = vpop.f32.mrf.mxu0
    %v1633 = vadd.f32 %v1609, %v1632
    %1634 = vdwg.mxu0
    %1635 = vmatpush.msra.mxu0 0.0
    %1636 = vmatpush.msra.mxu0 0.0
    %1637 = vmatpush.msra.mxu0 0.0
    %1638 = vmatpush.msra.mxu0 0.0
    %1639 = vmatpush.msra.mxu0 0.0
    %1640 = vmatpush.msra.mxu0 0.0
    %1641 = vmatpush.msra.mxu0 0.0
    %1642 = vmatpush.msra.mxu0 0.0
    %1643 = vmatpush.msra.mxu0 0.0
    %1644 = vmatpush.msra.mxu0 0.0
    %1645 = vmatpush.msra.mxu0 0.0
    %1646 = vmatpush.msra.mxu0 0.0
    %1647 = vmatpush.msra.mxu0 0.0
    %1648 = vmatpush.msra.mxu0 0.0
    %1649 = vmatpush.msra.mxu0 0.0
    %v1650 = vand.u32 %v746, 4294901760
    %v1651 = vsub.f32 %v746, %v1650
    %v1652 = vand.u32 %v1651, 4294901760
    %1653 = vmatpush.msra.mxu0 %v1652
    %v1654 = vand.u32 %v1386, 4294901760
    %1655 = vmatmul.f32.gmra.mxu0 %v1654
    %v1656 = vpop.f32.mrf.mxu0
    %v1657 = vadd.f32 %v1633, %v1656
    %1658 = vdwg.mxu0
    %1659 = vmatpush.msra.mxu0 0.0
    %1660 = vmatpush.msra.mxu0 0.0
    %1661 = vmatpush.msra.mxu0 0.0
    %1662 = vmatpush.msra.mxu0 0.0
    %1663 = vmatpush.msra.mxu0 0.0
    %1664 = vmatpush.msra.mxu0 0.0
    %1665 = vmatpush.msra.mxu0 0.0
    %1666 = vmatpush.msra.mxu0 0.0
    %1667 = vmatpush.msra.mxu0 0.0
    %1668 = vmatpush.msra.mxu0 0.0
    %1669 = vmatpush.msra.mxu0 0.0
    %1670 = vmatpush.msra.mxu0 0.0
    %1671 = vmatpush.msra.mxu0 0.0
    %1672 = vmatpush.msra.mxu0 0.0
    %1673 = vmatpush.msra.mxu0 0.0
    %v1674 = vand.u32 %v746, 4294901760
    %1675 = vmatpush.msra.mxu0 %v1674
    %v1676 = vand.u32 %v1386, 4294901760
    %1677 = vmatmul.f32.gmra.mxu0 %v1676
    %v1678 = vpop.f32.mrf.mxu0
    %v1679 = vadd.f32 %v1657, %v1678
    %1680 = vdwg.mxu0
    %1681 = vst [vmem:[#allocation9 + $0x8] sm:$0xff] %v1679
    // Predicated region
    $region26: #{tpu_custom_call.1} parent=1 // pred_check
      _
    $region27: #{tpu_custom_call.1} parent=1 // pred_check_branch
      %1683 = sbr.rel (0) target = $region29
    $region28: #{tpu_custom_call.1} parent=1 // pred_region
      %1685 = vsyncadd [#allocation4], 0
      %s1686 = sshll.u32 [#allocation8], 4
      %s1687 = int_to_ptr.vmem [resolvable:$true] %s1686
      %s1688 = sshll.u32 %s3, 4
      %s1689 = int_to_ptr.hbm [resolvable:$true] %s1688
      %1694 = dma.vmem_to_hbm [thread:$0]  %s1687, 256, %s1689, [#allocation4], 128, 128, 8
    $region29: #{tpu_custom_call.1} parent=1 // pred_fallthru
      _
    // Predicated region
    $region30: #{tpu_custom_call.1} parent=1 // pred_check
      _
    $region31: #{tpu_custom_call.1} parent=1 // pred_check_branch
      %1696 = sbr.rel (0) target = $region33
    $region32: #{tpu_custom_call.1} parent=1 // pred_region
      %1698 = vsyncadd [#allocation10], 0
      %s1699 = sshll.u32 [#allocation9], 4
      %s1700 = int_to_ptr.vmem [resolvable:$true] %s1699
      %s1701 = sshll.u32 %s4, 4
      %s1702 = int_to_ptr.hbm [resolvable:$true] %s1701
      %1707 = dma.vmem_to_hbm [thread:$0]  %s1700, 256, %s1702, [#allocation10], 128, 128, 8
    $region33: #{tpu_custom_call.1} parent=1 // pred_fallthru
      _
    // Predicated region
    $region34: #{tpu_custom_call.1} parent=1 // pred_check
      _
    $region35: #{tpu_custom_call.1} parent=1 // pred_check_branch
      %1709 = sbr.rel (0) target = $region37
    $region36: #{tpu_custom_call.1} parent=1 // pred_region
      %1711 = dma.done [#allocation4], 256
    $region37: #{tpu_custom_call.1} parent=1 // pred_fallthru
      _
    // Predicated region
    $region38: #{tpu_custom_call.1} parent=1 // pred_check
      _
    $region39: #{tpu_custom_call.1} parent=1 // pred_check_branch
      %1713 = sbr.rel (0) target = $region41
    $region40: #{tpu_custom_call.1} parent=1 // pred_region
      %1715 = dma.done [#allocation10], 256
    $region41: #{tpu_custom_call.1} parent=1 // pred_fallthru
      _
    %1716 = vsyncpa [#allocation3], 1
    %1717 = vsyncpa [#allocation6], 1
    %1718 = vsyncpa [#allocation4], 1
    %1719 = vsyncpa [#allocation10], 1

</llo_original>
